<compile_context>
chip_gen: v7x
topology: tpu7x:2x2x1
jax: 0.10.0
libtpu: 0.0.40
codegen_flags: <defaults>
</compile_context>

<pallas_src>
import functools

import jax
import jax.numpy as jnp
from jax import lax
from jax.experimental import pallas as pl
from jax.experimental.pallas import tpu as pltpu


def _sigmoid(x):
    return 1.0 / (1.0 + jnp.exp(-x))


def _encoder_kernel(src_ref, emb_ref, w_ih_ref, b_ih_ref, w_hh_ref,
                    w_fc_ref, b_fc_ref,
                    out_ref, hid_ref, cell_ref,
                    gx_ref, hall_ref,
                    *, src_len, batch, enc_hid):
    S, B, H = src_len, batch, enc_hid
    SB = S * B
    V = emb_ref.shape[0]

    # ---- Embedding for forward-time AND reversed-time streams in ONE matmul.
    idx = src_ref[...]                                        # (2*S*B, 1) int32
    iota = lax.broadcasted_iota(jnp.int32, (2 * SB, V), 1)
    one_hot = (iota == idx).astype(jnp.float32)               # (2*S*B, V)
    emb_all = jnp.dot(one_hot, emb_ref[...],
                      preferred_element_type=jnp.float32)     # (2*S*B, E)
    # Dropout: identity in eval/inference mode.

    # ---- Time-parallel input projection for BOTH directions in ONE matmul.
    #      w_ih_ref is block-diagonal + gate-interleaved (built in prepare_params):
    #      result row-block i holds [i_f(i) i_b(S-1-i) f_f f_b g_f g_b o_f o_b].
    x2 = jnp.concatenate([emb_all[:SB], emb_all[SB:]], axis=1)   # (S*B, 2E)
    gx_ref[...] = (jnp.dot(x2, w_ih_ref[...],
                           preferred_element_type=jnp.float32)
                   + b_ih_ref[...])                              # (S*B, 8H)

    # Hoist weight load out of the recurrence loop.
    w_hh = w_hh_ref[...]                                         # (2H, 8H)
    zeros = jnp.zeros((B, 2 * H), jnp.float32)

    # ---- Fused bidirectional recurrence: iteration i advances forward dir at
    #      time i and backward dir at time S-1-i, both in one matmul + one set of
    #      gate nonlinearities.  h/c layout: columns [0:H]=fwd, [H:2H]=bwd.
    def step(i, carry):
        h, c = carry
        g = (gx_ref[pl.ds(i * B, B), :]
             + jnp.dot(h, w_hh, preferred_element_type=jnp.float32))   # (B, 8H)
        i_g = _sigmoid(g[:, 0 * H:2 * H])
        f_g = _sigmoid(g[:, 2 * H:4 * H])
        g_g = jnp.tanh(g[:, 4 * H:6 * H])
        o_g = _sigmoid(g[:, 6 * H:8 * H])
        c_new = f_g * c + i_g * g_g
        h_new = o_g * jnp.tanh(c_new)
        hall_ref[pl.ds(i * B, B), :] = h_new
        return h_new, c_new

    h, c = lax.fori_loop(0, S, step, (zeros, zeros), unroll=True)

    # ---- Assemble outputs (fully static, time-parallel pass).
    #      out[t] = [fwd h at time t | bwd h at time t], where the bwd h for time t
    #      was produced at fused-loop iteration S-1-t.
    for t in range(S):
        fwd = hall_ref[pl.ds(t * B, B), :]
        bwd = hall_ref[pl.ds((S - 1 - t) * B, B), :]
        out_ref[t] = jnp.concatenate([fwd[:, 0:H], bwd[:, H:2 * H]], axis=-1)

    # ---- Final states + fc head: hidden = tanh(fc(cat(h_fwd_last, h_bwd_last))).
    #      h is already exactly that concatenation.
    cell_ref[0] = c[:, 0:H]
    cell_ref[1] = c[:, H:2 * H]
    hid_ref[...] = jnp.tanh(
        jnp.dot(h, w_fc_ref[...], preferred_element_type=jnp.float32)
        + b_fc_ref[...])


def _interleave_gate_blocks(f_mat, b_mat, H):
    """(rows,4H),(rows,4H) -> (rows,8H) with columns [i_f i_b f_f f_b g_f g_b o_f o_b]."""
    blocks = []
    for g in range(4):
        blocks.append(f_mat[:, g * H:(g + 1) * H])
        blocks.append(b_mat[:, g * H:(g + 1) * H])
    return jnp.concatenate(blocks, axis=1)


def prepare_params(raw):
    """One-time layout prep (hoisted out of the per-call hot path).

    raw holds PyTorch-layout parameters:
      emb    [V, E]
      w_ih_f / w_ih_b   [4H, E]     w_hh_f / w_hh_b   [4H, H]
      b_ih_f / b_ih_b / b_hh_f / b_hh_b  [4H]
      w_fc   [Dd, 2H]   b_fc [Dd]
    """
    H = raw["w_hh_f"].shape[1]
    E = raw["w_ih_f"].shape[1]
    zE = jnp.zeros((E, 4 * H), jnp.float32)
    zH = jnp.zeros((H, 4 * H), jnp.float32)

    # Block-diagonal, gate-interleaved input projection: rows 0:E act on the
    # forward-time embeddings, rows E:2E on the reversed-time embeddings.
    w_ih = jnp.concatenate(
        [_interleave_gate_blocks(raw["w_ih_f"].T, zE, H),
         _interleave_gate_blocks(zE, raw["w_ih_b"].T, H)], axis=0)       # (2E, 8H)
    # Block-diagonal, gate-interleaved hidden projection: rows 0:H act on h_fwd,
    # rows H:2H on h_bwd.
    w_hh = jnp.concatenate(
        [_interleave_gate_blocks(raw["w_hh_f"].T, zH, H),
         _interleave_gate_blocks(zH, raw["w_hh_b"].T, H)], axis=0)       # (2H, 8H)
    b_ih = _interleave_gate_blocks(
        (raw["b_ih_f"] + raw["b_hh_f"]).reshape(1, -1),
        (raw["b_ih_b"] + raw["b_hh_b"]).reshape(1, -1), H)               # (1, 8H)

    return dict(
        emb=raw["emb"],
        w_ih=w_ih, b_ih=b_ih, w_hh=w_hh,
        w_fc=raw["w_fc"].T, b_fc=raw["b_fc"].reshape(1, -1),             # (2H,Dd),(1,Dd)
    )


def encoder_forward(params, src):
    """src: [src_len, batch] int32 token ids.
    Returns (outputs [S,B,2H], hidden [B,Dd], cell [2,B,H])."""
    S, B = src.shape
    emb = params["emb"]
    V, E = emb.shape
    H = params["w_hh"].shape[0] // 2
    Dd = params["w_fc"].shape[1]

    # Forward-time and reversed-time token streams, stacked along rows.
    src_all = jnp.concatenate([src, src[::-1]], axis=0)
    src_all = src_all.reshape(2 * S * B, 1).astype(jnp.int32)

    def full(shape):
        n = len(shape)
        return pl.BlockSpec(shape, lambda i, n=n: (0,) * n)

    kernel = functools.partial(_encoder_kernel, src_len=S, batch=B, enc_hid=H)

    out_shapes = (
        jax.ShapeDtypeStruct((S, B, 2 * H), jnp.float32),   # LSTM outputs
        jax.ShapeDtypeStruct((B, Dd), jnp.float32),         # tanh(fc(cat(h_f, h_b)))
        jax.ShapeDtypeStruct((2, B, H), jnp.float32),       # final cell states
    )

    return pl.pallas_call(
        kernel,
        out_shape=out_shapes,
        grid=(1,),
        in_specs=[
            full((2 * S * B, 1)),    # src indices (fwd-time rows, then rev-time rows)
            full((V, E)),            # embedding table
            full((2 * E, 8 * H)),    # block-diag + gate-interleaved W_ih
            full((1, 8 * H)),        # merged biases (b_ih + b_hh), gate-interleaved
            full((2 * H, 8 * H)),    # block-diag + gate-interleaved W_hh
            full((2 * H, Dd)),       # fc weight
            full((1, Dd)),           # fc bias
        ],
        out_specs=(
            full((S, B, 2 * H)),
            full((B, Dd)),
            full((2, B, H)),
        ),
        scratch_shapes=[
            pltpu.VMEM((S * B, 8 * H), jnp.float32),   # time-parallel gate pre-acts
            pltpu.VMEM((S * B, 2 * H), jnp.float32),   # per-step fused hidden states
        ],
        compiler_params=pltpu.CompilerParams(
            dimension_semantics=("arbitrary",)),
    )(src_all, emb, params["w_ih"], params["b_ih"], params["w_hh"],
      params["w_fc"], params["b_fc"])


# ---------------- pure-JAX reference (mirrors PyTorch exactly) ----------------
def _hp_dot(a, b):
    return jnp.dot(a, b, precision=jax.lax.Precision.HIGHEST)


def _reference(raw, src):
    S, B = src.shape
    emb = raw["emb"][src]                                   # (S, B, E)
    H = raw["w_hh_f"].shape[1]

    def run_dir(w_ih, w_hh, b_ih, b_hh, reverse):
        h = jnp.zeros((B, H), jnp.float32)
        c = jnp.zeros((B, H), jnp.float32)
        outs = [None] * S
        order = range(S - 1, -1, -1) if reverse else range(S)
        for t in order:
            g = _hp_dot(emb[t], w_ih.T) + b_ih + _hp_dot(h, w_hh.T) + b_hh
            i = jax.nn.sigmoid(g[:, :H])
            f = jax.nn.sigmoid(g[:, H:2 * H])
            gg = jnp.tanh(g[:, 2 * H:3 * H])
            o = jax.nn.sigmoid(g[:, 3 * H:4 * H])
            c = f * c + i * gg
            h = o * jnp.tanh(c)
            outs[t] = h
        return jnp.stack(outs, axis=0), h, c

    of, hf, cf = run_dir(raw["w_ih_f"], raw["w_hh_f"], raw["b_ih_f"], raw["b_hh_f"], False)
    ob, hb, cb = run_dir(raw["w_ih_b"], raw["w_hh_b"], raw["b_ih_b"], raw["b_hh_b"], True)
    outputs = jnp.concatenate([of, ob], axis=-1)
    hidden = jnp.tanh(_hp_dot(jnp.concatenate([hf, hb], axis=1), raw["w_fc"].T)
                      + raw["b_fc"])
    cell = jnp.stack([cf, cb], axis=0)
    return outputs, hidden, cell


def init_params(key, input_dim, emb_dim, enc_hid_dim, dec_hid_dim):
    ks = jax.random.split(key, 11)
    H, E = enc_hid_dim, emb_dim
    kb = 1.0 / (H ** 0.5)
    fb = 1.0 / ((2 * H) ** 0.5)
    u = lambda k, shape, b: jax.random.uniform(k, shape, jnp.float32, -b, b)
    return dict(
        emb=jax.random.normal(ks[0], (input_dim, E), jnp.float32),
        w_ih_f=u(ks[1], (4 * H, E), kb), w_hh_f=u(ks[2], (4 * H, H), kb),
        b_ih_f=u(ks[3], (4 * H,), kb),   b_hh_f=u(ks[4], (4 * H,), kb),
        w_ih_b=u(ks[5], (4 * H, E), kb), w_hh_b=u(ks[6], (4 * H, H), kb),
        b_ih_b=u(ks[7], (4 * H,), kb),   b_hh_b=u(ks[8], (4 * H,), kb),
        w_fc=u(ks[9], (dec_hid_dim, 2 * H), fb),
        b_fc=u(ks[10], (dec_hid_dim,), fb),
    )


if __name__ == "__main__":
    input_dim, emb_dim, enc_hid_dim, dec_hid_dim = 100, 32, 16, 32
    src_len, batch = 8, 2
    # dropout rate irrelevant here: forward corresponds to eval() (identity dropout)

    key = jax.random.PRNGKey(0)
    kp, ks = jax.random.split(key)
    raw = init_params(kp, input_dim, emb_dim, enc_hid_dim, dec_hid_dim)
    src = jax.random.randint(ks, (src_len, batch), 0, input_dim, dtype=jnp.int32)

    params = prepare_params(raw)            # one-time layout prep (hoisted)
    fwd = jax.jit(encoder_forward)
    outputs, hidden, cell = jax.block_until_ready(fwd(params, src))

    ref_out, ref_hid, ref_cell = _reference(raw, src)

    assert outputs.shape == (src_len, batch, 2 * enc_hid_dim)
    assert hidden.shape == (batch, dec_hid_dim)
    assert cell.shape == (2, batch, enc_hid_dim)
    ok = (bool(jnp.allclose(outputs, ref_out, atol=1e-3, rtol=1e-3))
          and bool(jnp.allclose(hidden, ref_hid, atol=1e-3, rtol=1e-3))
          and bool(jnp.allclose(cell, ref_cell, atol=1e-3, rtol=1e-3)))
    assert ok, "mismatch vs reference"
    print("KERNEL_OK")
</pallas_src>

<mosaic_0001>
module attributes {stable_mosaic.version = 11 : i64} {
  func.func @_encoder_kernel(%arg0: i32, %arg1: memref<32x1xi32, #tpu.memory_space<vmem>>, %arg2: memref<100x32xf32, #tpu.memory_space<vmem>>, %arg3: memref<64x128xf32, #tpu.memory_space<vmem>>, %arg4: memref<1x128xf32, #tpu.memory_space<vmem>>, %arg5: memref<32x128xf32, #tpu.memory_space<vmem>>, %arg6: memref<32x32xf32, #tpu.memory_space<vmem>>, %arg7: memref<1x32xf32, #tpu.memory_space<vmem>>, %arg8: memref<8x2x32xf32, #tpu.memory_space<vmem>>, %arg9: memref<2x32xf32, #tpu.memory_space<vmem>>, %arg10: memref<2x2x16xf32, #tpu.memory_space<vmem>>, %arg11: memref<16x128xf32, #tpu.memory_space<vmem>>, %arg12: memref<16x32xf32, #tpu.memory_space<vmem>>) attributes {dimension_semantics = [#tpu.dimension_semantics<arbitrary>], iteration_bounds = array<i64: 1>, scalar_prefetch = 0 : i64, scratch_operands = 2 : i64, tpu.core_type = #tpu.core_type<tc>, window_params = [{pipeline_mode = #tpu.pipeline_mode<synchronous>, transform_indices = @transform_0, window_bounds = array<i64: 32, 1>}, {pipeline_mode = #tpu.pipeline_mode<synchronous>, transform_indices = @transform_1, window_bounds = array<i64: 100, 32>}, {pipeline_mode = #tpu.pipeline_mode<synchronous>, transform_indices = @transform_2, window_bounds = array<i64: 64, 128>}, {pipeline_mode = #tpu.pipeline_mode<synchronous>, transform_indices = @transform_3, window_bounds = array<i64: 1, 128>}, {pipeline_mode = #tpu.pipeline_mode<synchronous>, transform_indices = @transform_4, window_bounds = array<i64: 32, 128>}, {pipeline_mode = #tpu.pipeline_mode<synchronous>, transform_indices = @transform_5, window_bounds = array<i64: 32, 32>}, {pipeline_mode = #tpu.pipeline_mode<synchronous>, transform_indices = @transform_6, window_bounds = array<i64: 1, 32>}, {pipeline_mode = #tpu.pipeline_mode<synchronous>, transform_indices = @transform_7, window_bounds = array<i64: 8, 2, 32>}, {pipeline_mode = #tpu.pipeline_mode<synchronous>, transform_indices = @transform_8, window_bounds = array<i64: 2, 32>}, {pipeline_mode = #tpu.pipeline_mode<synchronous>, transform_indices = @transform_9, window_bounds = array<i64: 2, 2, 16>}]} {
    %c0 = arith.constant 0 : index
    %c0_0 = arith.constant 0 : index
    %0 = vector.load %arg1[%c0, %c0_0] : memref<32x1xi32, #tpu.memory_space<vmem>>, vector<32x1xi32>
    %1 = tpu.iota {dimensions = array<i32: 1>} : vector<32x100xi32>
    %2 = vector.broadcast %0 : vector<32x1xi32> to vector<32x100xi32>
    %3 = arith.cmpi eq, %1, %2 : vector<32x100xi32>
    %4 = arith.extui %3 : vector<32x100xi1> to vector<32x100xi32>
    %5 = arith.sitofp %4 : vector<32x100xi32> to vector<32x100xf32>
    %c0_1 = arith.constant 0 : index
    %c0_2 = arith.constant 0 : index
    %6 = vector.load %arg2[%c0_1, %c0_2] : memref<100x32xf32, #tpu.memory_space<vmem>>, vector<100x32xf32>
    %cst = arith.constant dense<0.000000e+00> : vector<32x32xf32>
    %7 = tpu.matmul %5, %6, %cst {dimension_numbers = #tpu.dot_dimension_numbers<[1], [0], [0], [1], [0, 0, 1, 1], [], []>} : vector<32x100xf32>, vector<100x32xf32>, vector<32x32xf32> -> vector<32x32xf32>
    %8 = vector.extract_strided_slice %7 {offsets = [0, 0], sizes = [16, 32], strides = [1, 1]} : vector<32x32xf32> to vector<16x32xf32>
    %9 = vector.extract_strided_slice %7 {offsets = [16, 0], sizes = [16, 32], strides = [1, 1]} : vector<32x32xf32> to vector<16x32xf32>
    %10 = tpu.concatenate %8, %9 in 1 : vector<16x32xf32>, vector<16x32xf32> -> vector<16x64xf32>
    %c0_3 = arith.constant 0 : index
    %c0_4 = arith.constant 0 : index
    %11 = vector.load %arg3[%c0_3, %c0_4] : memref<64x128xf32, #tpu.memory_space<vmem>>, vector<64x128xf32>
    %cst_5 = arith.constant dense<0.000000e+00> : vector<16x128xf32>
    %12 = tpu.matmul %10, %11, %cst_5 {dimension_numbers = #tpu.dot_dimension_numbers<[1], [0], [0], [1], [0, 0, 1, 1], [], []>} : vector<16x64xf32>, vector<64x128xf32>, vector<16x128xf32> -> vector<16x128xf32>
    %c0_6 = arith.constant 0 : index
    %c0_7 = arith.constant 0 : index
    %13 = vector.load %arg4[%c0_6, %c0_7] : memref<1x128xf32, #tpu.memory_space<vmem>>, vector<1x128xf32>
    %14 = vector.broadcast %13 : vector<1x128xf32> to vector<16x128xf32>
    %15 = arith.addf %12, %14 : vector<16x128xf32>
    %c0_8 = arith.constant 0 : index
    %c0_9 = arith.constant 0 : index
    %16 = vector.load %arg11[%c0_8, %c0_9] : memref<16x128xf32, #tpu.memory_space<vmem>>, vector<16x128xf32>
    tpu.vector_store %arg11[%c0_8, %c0_9], %15 {strides = array<i32>} : memref<16x128xf32, #tpu.memory_space<vmem>>, vector<16x128xf32>,
    %c0_10 = arith.constant 0 : index
    %c0_11 = arith.constant 0 : index
    %17 = vector.load %arg5[%c0_10, %c0_11] : memref<32x128xf32, #tpu.memory_space<vmem>>, vector<32x128xf32>
    %cst_12 = arith.constant 0.000000e+00 : f32
    %18 = vector.broadcast %cst_12 : f32 to vector<2x32xf32>
    %c0_i32 = arith.constant 0 : i32
    %c2_i32 = arith.constant 2 : i32
    %19 = arith.muli %c0_i32, %c2_i32 : i32
    %20 = arith.index_cast %19 : i32 to index
    %c0_13 = arith.constant 0 : index
    %21 = vector.load %arg11[%20, %c0_13] : memref<16x128xf32, #tpu.memory_space<vmem>>, vector<2x128xf32>
    %cst_14 = arith.constant dense<0.000000e+00> : vector<2x128xf32>
    %22 = tpu.matmul %18, %17, %cst_14 {dimension_numbers = #tpu.dot_dimension_numbers<[1], [0], [0], [1], [0, 0, 1, 1], [], []>} : vector<2x32xf32>, vector<32x128xf32>, vector<2x128xf32> -> vector<2x128xf32>
    %23 = arith.addf %21, %22 : vector<2x128xf32>
    %24 = vector.extract_strided_slice %23 {offsets = [0, 0], sizes = [2, 32], strides = [1, 1]} : vector<2x128xf32> to vector<2x32xf32>
    %cst_15 = arith.constant 0.000000e+00 : f32
    %25 = vector.broadcast %cst_15 : f32 to vector<2x32xf32>
    %26 = arith.subf %25, %24 : vector<2x32xf32>
    %27 = math.exp %26 : vector<2x32xf32>
    %cst_16 = arith.constant 1.000000e+00 : f32
    %28 = vector.broadcast %cst_16 : f32 to vector<2x32xf32>
    %29 = arith.addf %28, %27 : vector<2x32xf32>
    %cst_17 = arith.constant 1.000000e+00 : f32
    %30 = vector.broadcast %cst_17 : f32 to vector<2x32xf32>
    %31 = arith.divf %30, %29 : vector<2x32xf32>
    %32 = vector.extract_strided_slice %23 {offsets = [0, 32], sizes = [2, 32], strides = [1, 1]} : vector<2x128xf32> to vector<2x32xf32>
    %cst_18 = arith.constant 0.000000e+00 : f32
    %33 = vector.broadcast %cst_18 : f32 to vector<2x32xf32>
    %34 = arith.subf %33, %32 : vector<2x32xf32>
    %35 = math.exp %34 : vector<2x32xf32>
    %cst_19 = arith.constant 1.000000e+00 : f32
    %36 = vector.broadcast %cst_19 : f32 to vector<2x32xf32>
    %37 = arith.addf %36, %35 : vector<2x32xf32>
    %cst_20 = arith.constant 1.000000e+00 : f32
    %38 = vector.broadcast %cst_20 : f32 to vector<2x32xf32>
    %39 = arith.divf %38, %37 : vector<2x32xf32>
    %40 = vector.extract_strided_slice %23 {offsets = [0, 64], sizes = [2, 32], strides = [1, 1]} : vector<2x128xf32> to vector<2x32xf32>
    %41 = math.tanh %40 : vector<2x32xf32>
    %42 = vector.extract_strided_slice %23 {offsets = [0, 96], sizes = [2, 32], strides = [1, 1]} : vector<2x128xf32> to vector<2x32xf32>
    %cst_21 = arith.constant 0.000000e+00 : f32
    %43 = vector.broadcast %cst_21 : f32 to vector<2x32xf32>
    %44 = arith.subf %43, %42 : vector<2x32xf32>
    %45 = math.exp %44 : vector<2x32xf32>
    %cst_22 = arith.constant 1.000000e+00 : f32
    %46 = vector.broadcast %cst_22 : f32 to vector<2x32xf32>
    %47 = arith.addf %46, %45 : vector<2x32xf32>
    %cst_23 = arith.constant 1.000000e+00 : f32
    %48 = vector.broadcast %cst_23 : f32 to vector<2x32xf32>
    %49 = arith.divf %48, %47 : vector<2x32xf32>
    %50 = arith.mulf %39, %18 : vector<2x32xf32>
    %51 = arith.mulf %31, %41 : vector<2x32xf32>
    %52 = arith.addf %50, %51 : vector<2x32xf32>
    %53 = math.tanh %52 : vector<2x32xf32>
    %54 = arith.mulf %49, %53 : vector<2x32xf32>
    %c2_i32_24 = arith.constant 2 : i32
    %55 = arith.muli %c0_i32, %c2_i32_24 : i32
    %56 = arith.index_cast %55 : i32 to index
    %c0_25 = arith.constant 0 : index
    %57 = vector.load %arg12[%56, %c0_25] : memref<16x32xf32, #tpu.memory_space<vmem>>, vector<2x32xf32>
    tpu.vector_store %arg12[%56, %c0_25], %54 {strides = array<i32>} : memref<16x32xf32, #tpu.memory_space<vmem>>, vector<2x32xf32>,
    %c1_i32 = arith.constant 1 : i32
    %c2_i32_26 = arith.constant 2 : i32
    %58 = arith.muli %c1_i32, %c2_i32_26 : i32
    %59 = arith.index_cast %58 : i32 to index
    %c0_27 = arith.constant 0 : index
    %60 = vector.load %arg11[%59, %c0_27] : memref<16x128xf32, #tpu.memory_space<vmem>>, vector<2x128xf32>
    %cst_28 = arith.constant dense<0.000000e+00> : vector<2x128xf32>
    %61 = tpu.matmul %54, %17, %cst_28 {dimension_numbers = #tpu.dot_dimension_numbers<[1], [0], [0], [1], [0, 0, 1, 1], [], []>} : vector<2x32xf32>, vector<32x128xf32>, vector<2x128xf32> -> vector<2x128xf32>
    %62 = arith.addf %60, %61 : vector<2x128xf32>
    %63 = vector.extract_strided_slice %62 {offsets = [0, 0], sizes = [2, 32], strides = [1, 1]} : vector<2x128xf32> to vector<2x32xf32>
    %cst_29 = arith.constant 0.000000e+00 : f32
    %64 = vector.broadcast %cst_29 : f32 to vector<2x32xf32>
    %65 = arith.subf %64, %63 : vector<2x32xf32>
    %66 = math.exp %65 : vector<2x32xf32>
    %cst_30 = arith.constant 1.000000e+00 : f32
    %67 = vector.broadcast %cst_30 : f32 to vector<2x32xf32>
    %68 = arith.addf %67, %66 : vector<2x32xf32>
    %cst_31 = arith.constant 1.000000e+00 : f32
    %69 = vector.broadcast %cst_31 : f32 to vector<2x32xf32>
    %70 = arith.divf %69, %68 : vector<2x32xf32>
    %71 = vector.extract_strided_slice %62 {offsets = [0, 32], sizes = [2, 32], strides = [1, 1]} : vector<2x128xf32> to vector<2x32xf32>
    %cst_32 = arith.constant 0.000000e+00 : f32
    %72 = vector.broadcast %cst_32 : f32 to vector<2x32xf32>
    %73 = arith.subf %72, %71 : vector<2x32xf32>
    %74 = math.exp %73 : vector<2x32xf32>
    %cst_33 = arith.constant 1.000000e+00 : f32
    %75 = vector.broadcast %cst_33 : f32 to vector<2x32xf32>
    %76 = arith.addf %75, %74 : vector<2x32xf32>
    %cst_34 = arith.constant 1.000000e+00 : f32
    %77 = vector.broadcast %cst_34 : f32 to vector<2x32xf32>
    %78 = arith.divf %77, %76 : vector<2x32xf32>
    %79 = vector.extract_strided_slice %62 {offsets = [0, 64], sizes = [2, 32], strides = [1, 1]} : vector<2x128xf32> to vector<2x32xf32>
    %80 = math.tanh %79 : vector<2x32xf32>
    %81 = vector.extract_strided_slice %62 {offsets = [0, 96], sizes = [2, 32], strides = [1, 1]} : vector<2x128xf32> to vector<2x32xf32>
    %cst_35 = arith.constant 0.000000e+00 : f32
    %82 = vector.broadcast %cst_35 : f32 to vector<2x32xf32>
    %83 = arith.subf %82, %81 : vector<2x32xf32>
    %84 = math.exp %83 : vector<2x32xf32>
    %cst_36 = arith.constant 1.000000e+00 : f32
    %85 = vector.broadcast %cst_36 : f32 to vector<2x32xf32>
    %86 = arith.addf %85, %84 : vector<2x32xf32>
    %cst_37 = arith.constant 1.000000e+00 : f32
    %87 = vector.broadcast %cst_37 : f32 to vector<2x32xf32>
    %88 = arith.divf %87, %86 : vector<2x32xf32>
    %89 = arith.mulf %78, %52 : vector<2x32xf32>
    %90 = arith.mulf %70, %80 : vector<2x32xf32>
    %91 = arith.addf %89, %90 : vector<2x32xf32>
    %92 = math.tanh %91 : vector<2x32xf32>
    %93 = arith.mulf %88, %92 : vector<2x32xf32>
    %c2_i32_38 = arith.constant 2 : i32
    %94 = arith.muli %c1_i32, %c2_i32_38 : i32
    %95 = arith.index_cast %94 : i32 to index
    %c0_39 = arith.constant 0 : index
    %96 = vector.load %arg12[%95, %c0_39] : memref<16x32xf32, #tpu.memory_space<vmem>>, vector<2x32xf32>
    tpu.vector_store %arg12[%95, %c0_39], %93 {strides = array<i32>} : memref<16x32xf32, #tpu.memory_space<vmem>>, vector<2x32xf32>,
    %c2_i32_40 = arith.constant 2 : i32
    %c2_i32_41 = arith.constant 2 : i32
    %97 = arith.muli %c2_i32_40, %c2_i32_41 : i32
    %98 = arith.index_cast %97 : i32 to index
    %c0_42 = arith.constant 0 : index
    %99 = vector.load %arg11[%98, %c0_42] : memref<16x128xf32, #tpu.memory_space<vmem>>, vector<2x128xf32>
    %cst_43 = arith.constant dense<0.000000e+00> : vector<2x128xf32>
    %100 = tpu.matmul %93, %17, %cst_43 {dimension_numbers = #tpu.dot_dimension_numbers<[1], [0], [0], [1], [0, 0, 1, 1], [], []>} : vector<2x32xf32>, vector<32x128xf32>, vector<2x128xf32> -> vector<2x128xf32>
    %101 = arith.addf %99, %100 : vector<2x128xf32>
    %102 = vector.extract_strided_slice %101 {offsets = [0, 0], sizes = [2, 32], strides = [1, 1]} : vector<2x128xf32> to vector<2x32xf32>
    %cst_44 = arith.constant 0.000000e+00 : f32
    %103 = vector.broadcast %cst_44 : f32 to vector<2x32xf32>
    %104 = arith.subf %103, %102 : vector<2x32xf32>
    %105 = math.exp %104 : vector<2x32xf32>
    %cst_45 = arith.constant 1.000000e+00 : f32
    %106 = vector.broadcast %cst_45 : f32 to vector<2x32xf32>
    %107 = arith.addf %106, %105 : vector<2x32xf32>
    %cst_46 = arith.constant 1.000000e+00 : f32
    %108 = vector.broadcast %cst_46 : f32 to vector<2x32xf32>
    %109 = arith.divf %108, %107 : vector<2x32xf32>
    %110 = vector.extract_strided_slice %101 {offsets = [0, 32], sizes = [2, 32], strides = [1, 1]} : vector<2x128xf32> to vector<2x32xf32>
    %cst_47 = arith.constant 0.000000e+00 : f32
    %111 = vector.broadcast %cst_47 : f32 to vector<2x32xf32>
    %112 = arith.subf %111, %110 : vector<2x32xf32>
    %113 = math.exp %112 : vector<2x32xf32>
    %cst_48 = arith.constant 1.000000e+00 : f32
    %114 = vector.broadcast %cst_48 : f32 to vector<2x32xf32>
    %115 = arith.addf %114, %113 : vector<2x32xf32>
    %cst_49 = arith.constant 1.000000e+00 : f32
    %116 = vector.broadcast %cst_49 : f32 to vector<2x32xf32>
    %117 = arith.divf %116, %115 : vector<2x32xf32>
    %118 = vector.extract_strided_slice %101 {offsets = [0, 64], sizes = [2, 32], strides = [1, 1]} : vector<2x128xf32> to vector<2x32xf32>
    %119 = math.tanh %118 : vector<2x32xf32>
    %120 = vector.extract_strided_slice %101 {offsets = [0, 96], sizes = [2, 32], strides = [1, 1]} : vector<2x128xf32> to vector<2x32xf32>
    %cst_50 = arith.constant 0.000000e+00 : f32
    %121 = vector.broadcast %cst_50 : f32 to vector<2x32xf32>
    %122 = arith.subf %121, %120 : vector<2x32xf32>
    %123 = math.exp %122 : vector<2x32xf32>
    %cst_51 = arith.constant 1.000000e+00 : f32
    %124 = vector.broadcast %cst_51 : f32 to vector<2x32xf32>
    %125 = arith.addf %124, %123 : vector<2x32xf32>
    %cst_52 = arith.constant 1.000000e+00 : f32
    %126 = vector.broadcast %cst_52 : f32 to vector<2x32xf32>
    %127 = arith.divf %126, %125 : vector<2x32xf32>
    %128 = arith.mulf %117, %91 : vector<2x32xf32>
    %129 = arith.mulf %109, %119 : vector<2x32xf32>
    %130 = arith.addf %128, %129 : vector<2x32xf32>
    %131 = math.tanh %130 : vector<2x32xf32>
    %132 = arith.mulf %127, %131 : vector<2x32xf32>
    %c2_i32_53 = arith.constant 2 : i32
    %133 = arith.muli %c2_i32_40, %c2_i32_53 : i32
    %134 = arith.index_cast %133 : i32 to index
    %c0_54 = arith.constant 0 : index
    %135 = vector.load %arg12[%134, %c0_54] : memref<16x32xf32, #tpu.memory_space<vmem>>, vector<2x32xf32>
    tpu.vector_store %arg12[%134, %c0_54], %132 {strides = array<i32>} : memref<16x32xf32, #tpu.memory_space<vmem>>, vector<2x32xf32>,
    %c3_i32 = arith.constant 3 : i32
    %c2_i32_55 = arith.constant 2 : i32
    %136 = arith.muli %c3_i32, %c2_i32_55 : i32
    %137 = arith.index_cast %136 : i32 to index
    %c0_56 = arith.constant 0 : index
    %138 = vector.load %arg11[%137, %c0_56] : memref<16x128xf32, #tpu.memory_space<vmem>>, vector<2x128xf32>
    %cst_57 = arith.constant dense<0.000000e+00> : vector<2x128xf32>
    %139 = tpu.matmul %132, %17, %cst_57 {dimension_numbers = #tpu.dot_dimension_numbers<[1], [0], [0], [1], [0, 0, 1, 1], [], []>} : vector<2x32xf32>, vector<32x128xf32>, vector<2x128xf32> -> vector<2x128xf32>
    %140 = arith.addf %138, %139 : vector<2x128xf32>
    %141 = vector.extract_strided_slice %140 {offsets = [0, 0], sizes = [2, 32], strides = [1, 1]} : vector<2x128xf32> to vector<2x32xf32>
    %cst_58 = arith.constant 0.000000e+00 : f32
    %142 = vector.broadcast %cst_58 : f32 to vector<2x32xf32>
    %143 = arith.subf %142, %141 : vector<2x32xf32>
    %144 = math.exp %143 : vector<2x32xf32>
    %cst_59 = arith.constant 1.000000e+00 : f32
    %145 = vector.broadcast %cst_59 : f32 to vector<2x32xf32>
    %146 = arith.addf %145, %144 : vector<2x32xf32>
    %cst_60 = arith.constant 1.000000e+00 : f32
    %147 = vector.broadcast %cst_60 : f32 to vector<2x32xf32>
    %148 = arith.divf %147, %146 : vector<2x32xf32>
    %149 = vector.extract_strided_slice %140 {offsets = [0, 32], sizes = [2, 32], strides = [1, 1]} : vector<2x128xf32> to vector<2x32xf32>
    %cst_61 = arith.constant 0.000000e+00 : f32
    %150 = vector.broadcast %cst_61 : f32 to vector<2x32xf32>
    %151 = arith.subf %150, %149 : vector<2x32xf32>
    %152 = math.exp %151 : vector<2x32xf32>
    %cst_62 = arith.constant 1.000000e+00 : f32
    %153 = vector.broadcast %cst_62 : f32 to vector<2x32xf32>
    %154 = arith.addf %153, %152 : vector<2x32xf32>
    %cst_63 = arith.constant 1.000000e+00 : f32
    %155 = vector.broadcast %cst_63 : f32 to vector<2x32xf32>
    %156 = arith.divf %155, %154 : vector<2x32xf32>
    %157 = vector.extract_strided_slice %140 {offsets = [0, 64], sizes = [2, 32], strides = [1, 1]} : vector<2x128xf32> to vector<2x32xf32>
    %158 = math.tanh %157 : vector<2x32xf32>
    %159 = vector.extract_strided_slice %140 {offsets = [0, 96], sizes = [2, 32], strides = [1, 1]} : vector<2x128xf32> to vector<2x32xf32>
    %cst_64 = arith.constant 0.000000e+00 : f32
    %160 = vector.broadcast %cst_64 : f32 to vector<2x32xf32>
    %161 = arith.subf %160, %159 : vector<2x32xf32>
    %162 = math.exp %161 : vector<2x32xf32>
    %cst_65 = arith.constant 1.000000e+00 : f32
    %163 = vector.broadcast %cst_65 : f32 to vector<2x32xf32>
    %164 = arith.addf %163, %162 : vector<2x32xf32>
    %cst_66 = arith.constant 1.000000e+00 : f32
    %165 = vector.broadcast %cst_66 : f32 to vector<2x32xf32>
    %166 = arith.divf %165, %164 : vector<2x32xf32>
    %167 = arith.mulf %156, %130 : vector<2x32xf32>
    %168 = arith.mulf %148, %158 : vector<2x32xf32>
    %169 = arith.addf %167, %168 : vector<2x32xf32>
    %170 = math.tanh %169 : vector<2x32xf32>
    %171 = arith.mulf %166, %170 : vector<2x32xf32>
    %c2_i32_67 = arith.constant 2 : i32
    %172 = arith.muli %c3_i32, %c2_i32_67 : i32
    %173 = arith.index_cast %172 : i32 to index
    %c0_68 = arith.constant 0 : index
    %174 = vector.load %arg12[%173, %c0_68] : memref<16x32xf32, #tpu.memory_space<vmem>>, vector<2x32xf32>
    tpu.vector_store %arg12[%173, %c0_68], %171 {strides = array<i32>} : memref<16x32xf32, #tpu.memory_space<vmem>>, vector<2x32xf32>,
    %c4_i32 = arith.constant 4 : i32
    %c2_i32_69 = arith.constant 2 : i32
    %175 = arith.muli %c4_i32, %c2_i32_69 : i32
    %176 = arith.index_cast %175 : i32 to index
    %c0_70 = arith.constant 0 : index
    %177 = vector.load %arg11[%176, %c0_70] : memref<16x128xf32, #tpu.memory_space<vmem>>, vector<2x128xf32>
    %cst_71 = arith.constant dense<0.000000e+00> : vector<2x128xf32>
    %178 = tpu.matmul %171, %17, %cst_71 {dimension_numbers = #tpu.dot_dimension_numbers<[1], [0], [0], [1], [0, 0, 1, 1], [], []>} : vector<2x32xf32>, vector<32x128xf32>, vector<2x128xf32> -> vector<2x128xf32>
    %179 = arith.addf %177, %178 : vector<2x128xf32>
    %180 = vector.extract_strided_slice %179 {offsets = [0, 0], sizes = [2, 32], strides = [1, 1]} : vector<2x128xf32> to vector<2x32xf32>
    %cst_72 = arith.constant 0.000000e+00 : f32
    %181 = vector.broadcast %cst_72 : f32 to vector<2x32xf32>
    %182 = arith.subf %181, %180 : vector<2x32xf32>
    %183 = math.exp %182 : vector<2x32xf32>
    %cst_73 = arith.constant 1.000000e+00 : f32
    %184 = vector.broadcast %cst_73 : f32 to vector<2x32xf32>
    %185 = arith.addf %184, %183 : vector<2x32xf32>
    %cst_74 = arith.constant 1.000000e+00 : f32
    %186 = vector.broadcast %cst_74 : f32 to vector<2x32xf32>
    %187 = arith.divf %186, %185 : vector<2x32xf32>
    %188 = vector.extract_strided_slice %179 {offsets = [0, 32], sizes = [2, 32], strides = [1, 1]} : vector<2x128xf32> to vector<2x32xf32>
    %cst_75 = arith.constant 0.000000e+00 : f32
    %189 = vector.broadcast %cst_75 : f32 to vector<2x32xf32>
    %190 = arith.subf %189, %188 : vector<2x32xf32>
    %191 = math.exp %190 : vector<2x32xf32>
    %cst_76 = arith.constant 1.000000e+00 : f32
    %192 = vector.broadcast %cst_76 : f32 to vector<2x32xf32>
    %193 = arith.addf %192, %191 : vector<2x32xf32>
    %cst_77 = arith.constant 1.000000e+00 : f32
    %194 = vector.broadcast %cst_77 : f32 to vector<2x32xf32>
    %195 = arith.divf %194, %193 : vector<2x32xf32>
    %196 = vector.extract_strided_slice %179 {offsets = [0, 64], sizes = [2, 32], strides = [1, 1]} : vector<2x128xf32> to vector<2x32xf32>
    %197 = math.tanh %196 : vector<2x32xf32>
    %198 = vector.extract_strided_slice %179 {offsets = [0, 96], sizes = [2, 32], strides = [1, 1]} : vector<2x128xf32> to vector<2x32xf32>
    %cst_78 = arith.constant 0.000000e+00 : f32
    %199 = vector.broadcast %cst_78 : f32 to vector<2x32xf32>
    %200 = arith.subf %199, %198 : vector<2x32xf32>
    %201 = math.exp %200 : vector<2x32xf32>
    %cst_79 = arith.constant 1.000000e+00 : f32
    %202 = vector.broadcast %cst_79 : f32 to vector<2x32xf32>
    %203 = arith.addf %202, %201 : vector<2x32xf32>
    %cst_80 = arith.constant 1.000000e+00 : f32
    %204 = vector.broadcast %cst_80 : f32 to vector<2x32xf32>
    %205 = arith.divf %204, %203 : vector<2x32xf32>
    %206 = arith.mulf %195, %169 : vector<2x32xf32>
    %207 = arith.mulf %187, %197 : vector<2x32xf32>
    %208 = arith.addf %206, %207 : vector<2x32xf32>
    %209 = math.tanh %208 : vector<2x32xf32>
    %210 = arith.mulf %205, %209 : vector<2x32xf32>
    %c2_i32_81 = arith.constant 2 : i32
    %211 = arith.muli %c4_i32, %c2_i32_81 : i32
    %212 = arith.index_cast %211 : i32 to index
    %c0_82 = arith.constant 0 : index
    %213 = vector.load %arg12[%212, %c0_82] : memref<16x32xf32, #tpu.memory_space<vmem>>, vector<2x32xf32>
    tpu.vector_store %arg12[%212, %c0_82], %210 {strides = array<i32>} : memref<16x32xf32, #tpu.memory_space<vmem>>, vector<2x32xf32>,
    %c5_i32 = arith.constant 5 : i32
    %c2_i32_83 = arith.constant 2 : i32
    %214 = arith.muli %c5_i32, %c2_i32_83 : i32
    %215 = arith.index_cast %214 : i32 to index
    %c0_84 = arith.constant 0 : index
    %216 = vector.load %arg11[%215, %c0_84] : memref<16x128xf32, #tpu.memory_space<vmem>>, vector<2x128xf32>
    %cst_85 = arith.constant dense<0.000000e+00> : vector<2x128xf32>
    %217 = tpu.matmul %210, %17, %cst_85 {dimension_numbers = #tpu.dot_dimension_numbers<[1], [0], [0], [1], [0, 0, 1, 1], [], []>} : vector<2x32xf32>, vector<32x128xf32>, vector<2x128xf32> -> vector<2x128xf32>
    %218 = arith.addf %216, %217 : vector<2x128xf32>
    %219 = vector.extract_strided_slice %218 {offsets = [0, 0], sizes = [2, 32], strides = [1, 1]} : vector<2x128xf32> to vector<2x32xf32>
    %cst_86 = arith.constant 0.000000e+00 : f32
    %220 = vector.broadcast %cst_86 : f32 to vector<2x32xf32>
    %221 = arith.subf %220, %219 : vector<2x32xf32>
    %222 = math.exp %221 : vector<2x32xf32>
    %cst_87 = arith.constant 1.000000e+00 : f32
    %223 = vector.broadcast %cst_87 : f32 to vector<2x32xf32>
    %224 = arith.addf %223, %222 : vector<2x32xf32>
    %cst_88 = arith.constant 1.000000e+00 : f32
    %225 = vector.broadcast %cst_88 : f32 to vector<2x32xf32>
    %226 = arith.divf %225, %224 : vector<2x32xf32>
    %227 = vector.extract_strided_slice %218 {offsets = [0, 32], sizes = [2, 32], strides = [1, 1]} : vector<2x128xf32> to vector<2x32xf32>
    %cst_89 = arith.constant 0.000000e+00 : f32
    %228 = vector.broadcast %cst_89 : f32 to vector<2x32xf32>
    %229 = arith.subf %228, %227 : vector<2x32xf32>
    %230 = math.exp %229 : vector<2x32xf32>
    %cst_90 = arith.constant 1.000000e+00 : f32
    %231 = vector.broadcast %cst_90 : f32 to vector<2x32xf32>
    %232 = arith.addf %231, %230 : vector<2x32xf32>
    %cst_91 = arith.constant 1.000000e+00 : f32
    %233 = vector.broadcast %cst_91 : f32 to vector<2x32xf32>
    %234 = arith.divf %233, %232 : vector<2x32xf32>
    %235 = vector.extract_strided_slice %218 {offsets = [0, 64], sizes = [2, 32], strides = [1, 1]} : vector<2x128xf32> to vector<2x32xf32>
    %236 = math.tanh %235 : vector<2x32xf32>
    %237 = vector.extract_strided_slice %218 {offsets = [0, 96], sizes = [2, 32], strides = [1, 1]} : vector<2x128xf32> to vector<2x32xf32>
    %cst_92 = arith.constant 0.000000e+00 : f32
    %238 = vector.broadcast %cst_92 : f32 to vector<2x32xf32>
    %239 = arith.subf %238, %237 : vector<2x32xf32>
    %240 = math.exp %239 : vector<2x32xf32>
    %cst_93 = arith.constant 1.000000e+00 : f32
    %241 = vector.broadcast %cst_93 : f32 to vector<2x32xf32>
    %242 = arith.addf %241, %240 : vector<2x32xf32>
    %cst_94 = arith.constant 1.000000e+00 : f32
    %243 = vector.broadcast %cst_94 : f32 to vector<2x32xf32>
    %244 = arith.divf %243, %242 : vector<2x32xf32>
    %245 = arith.mulf %234, %208 : vector<2x32xf32>
    %246 = arith.mulf %226, %236 : vector<2x32xf32>
    %247 = arith.addf %245, %246 : vector<2x32xf32>
    %248 = math.tanh %247 : vector<2x32xf32>
    %249 = arith.mulf %244, %248 : vector<2x32xf32>
    %c2_i32_95 = arith.constant 2 : i32
    %250 = arith.muli %c5_i32, %c2_i32_95 : i32
    %251 = arith.index_cast %250 : i32 to index
    %c0_96 = arith.constant 0 : index
    %252 = vector.load %arg12[%251, %c0_96] : memref<16x32xf32, #tpu.memory_space<vmem>>, vector<2x32xf32>
    tpu.vector_store %arg12[%251, %c0_96], %249 {strides = array<i32>} : memref<16x32xf32, #tpu.memory_space<vmem>>, vector<2x32xf32>,
    %c6_i32 = arith.constant 6 : i32
    %c2_i32_97 = arith.constant 2 : i32
    %253 = arith.muli %c6_i32, %c2_i32_97 : i32
    %254 = arith.index_cast %253 : i32 to index
    %c0_98 = arith.constant 0 : index
    %255 = vector.load %arg11[%254, %c0_98] : memref<16x128xf32, #tpu.memory_space<vmem>>, vector<2x128xf32>
    %cst_99 = arith.constant dense<0.000000e+00> : vector<2x128xf32>
    %256 = tpu.matmul %249, %17, %cst_99 {dimension_numbers = #tpu.dot_dimension_numbers<[1], [0], [0], [1], [0, 0, 1, 1], [], []>} : vector<2x32xf32>, vector<32x128xf32>, vector<2x128xf32> -> vector<2x128xf32>
    %257 = arith.addf %255, %256 : vector<2x128xf32>
    %258 = vector.extract_strided_slice %257 {offsets = [0, 0], sizes = [2, 32], strides = [1, 1]} : vector<2x128xf32> to vector<2x32xf32>
    %cst_100 = arith.constant 0.000000e+00 : f32
    %259 = vector.broadcast %cst_100 : f32 to vector<2x32xf32>
    %260 = arith.subf %259, %258 : vector<2x32xf32>
    %261 = math.exp %260 : vector<2x32xf32>
    %cst_101 = arith.constant 1.000000e+00 : f32
    %262 = vector.broadcast %cst_101 : f32 to vector<2x32xf32>
    %263 = arith.addf %262, %261 : vector<2x32xf32>
    %cst_102 = arith.constant 1.000000e+00 : f32
    %264 = vector.broadcast %cst_102 : f32 to vector<2x32xf32>
    %265 = arith.divf %264, %263 : vector<2x32xf32>
    %266 = vector.extract_strided_slice %257 {offsets = [0, 32], sizes = [2, 32], strides = [1, 1]} : vector<2x128xf32> to vector<2x32xf32>
    %cst_103 = arith.constant 0.000000e+00 : f32
    %267 = vector.broadcast %cst_103 : f32 to vector<2x32xf32>
    %268 = arith.subf %267, %266 : vector<2x32xf32>
    %269 = math.exp %268 : vector<2x32xf32>
    %cst_104 = arith.constant 1.000000e+00 : f32
    %270 = vector.broadcast %cst_104 : f32 to vector<2x32xf32>
    %271 = arith.addf %270, %269 : vector<2x32xf32>
    %cst_105 = arith.constant 1.000000e+00 : f32
    %272 = vector.broadcast %cst_105 : f32 to vector<2x32xf32>
    %273 = arith.divf %272, %271 : vector<2x32xf32>
    %274 = vector.extract_strided_slice %257 {offsets = [0, 64], sizes = [2, 32], strides = [1, 1]} : vector<2x128xf32> to vector<2x32xf32>
    %275 = math.tanh %274 : vector<2x32xf32>
    %276 = vector.extract_strided_slice %257 {offsets = [0, 96], sizes = [2, 32], strides = [1, 1]} : vector<2x128xf32> to vector<2x32xf32>
    %cst_106 = arith.constant 0.000000e+00 : f32
    %277 = vector.broadcast %cst_106 : f32 to vector<2x32xf32>
    %278 = arith.subf %277, %276 : vector<2x32xf32>
    %279 = math.exp %278 : vector<2x32xf32>
    %cst_107 = arith.constant 1.000000e+00 : f32
    %280 = vector.broadcast %cst_107 : f32 to vector<2x32xf32>
    %281 = arith.addf %280, %279 : vector<2x32xf32>
    %cst_108 = arith.constant 1.000000e+00 : f32
    %282 = vector.broadcast %cst_108 : f32 to vector<2x32xf32>
    %283 = arith.divf %282, %281 : vector<2x32xf32>
    %284 = arith.mulf %273, %247 : vector<2x32xf32>
    %285 = arith.mulf %265, %275 : vector<2x32xf32>
    %286 = arith.addf %284, %285 : vector<2x32xf32>
    %287 = math.tanh %286 : vector<2x32xf32>
    %288 = arith.mulf %283, %287 : vector<2x32xf32>
    %c2_i32_109 = arith.constant 2 : i32
    %289 = arith.muli %c6_i32, %c2_i32_109 : i32
    %290 = arith.index_cast %289 : i32 to index
    %c0_110 = arith.constant 0 : index
    %291 = vector.load %arg12[%290, %c0_110] : memref<16x32xf32, #tpu.memory_space<vmem>>, vector<2x32xf32>
    tpu.vector_store %arg12[%290, %c0_110], %288 {strides = array<i32>} : memref<16x32xf32, #tpu.memory_space<vmem>>, vector<2x32xf32>,
    %c7_i32 = arith.constant 7 : i32
    %c2_i32_111 = arith.constant 2 : i32
    %292 = arith.muli %c7_i32, %c2_i32_111 : i32
    %293 = arith.index_cast %292 : i32 to index
    %c0_112 = arith.constant 0 : index
    %294 = vector.load %arg11[%293, %c0_112] : memref<16x128xf32, #tpu.memory_space<vmem>>, vector<2x128xf32>
    %cst_113 = arith.constant dense<0.000000e+00> : vector<2x128xf32>
    %295 = tpu.matmul %288, %17, %cst_113 {dimension_numbers = #tpu.dot_dimension_numbers<[1], [0], [0], [1], [0, 0, 1, 1], [], []>} : vector<2x32xf32>, vector<32x128xf32>, vector<2x128xf32> -> vector<2x128xf32>
    %296 = arith.addf %294, %295 : vector<2x128xf32>
    %297 = vector.extract_strided_slice %296 {offsets = [0, 0], sizes = [2, 32], strides = [1, 1]} : vector<2x128xf32> to vector<2x32xf32>
    %cst_114 = arith.constant 0.000000e+00 : f32
    %298 = vector.broadcast %cst_114 : f32 to vector<2x32xf32>
    %299 = arith.subf %298, %297 : vector<2x32xf32>
    %300 = math.exp %299 : vector<2x32xf32>
    %cst_115 = arith.constant 1.000000e+00 : f32
    %301 = vector.broadcast %cst_115 : f32 to vector<2x32xf32>
    %302 = arith.addf %301, %300 : vector<2x32xf32>
    %cst_116 = arith.constant 1.000000e+00 : f32
    %303 = vector.broadcast %cst_116 : f32 to vector<2x32xf32>
    %304 = arith.divf %303, %302 : vector<2x32xf32>
    %305 = vector.extract_strided_slice %296 {offsets = [0, 32], sizes = [2, 32], strides = [1, 1]} : vector<2x128xf32> to vector<2x32xf32>
    %cst_117 = arith.constant 0.000000e+00 : f32
    %306 = vector.broadcast %cst_117 : f32 to vector<2x32xf32>
    %307 = arith.subf %306, %305 : vector<2x32xf32>
    %308 = math.exp %307 : vector<2x32xf32>
    %cst_118 = arith.constant 1.000000e+00 : f32
    %309 = vector.broadcast %cst_118 : f32 to vector<2x32xf32>
    %310 = arith.addf %309, %308 : vector<2x32xf32>
    %cst_119 = arith.constant 1.000000e+00 : f32
    %311 = vector.broadcast %cst_119 : f32 to vector<2x32xf32>
    %312 = arith.divf %311, %310 : vector<2x32xf32>
    %313 = vector.extract_strided_slice %296 {offsets = [0, 64], sizes = [2, 32], strides = [1, 1]} : vector<2x128xf32> to vector<2x32xf32>
    %314 = math.tanh %313 : vector<2x32xf32>
    %315 = vector.extract_strided_slice %296 {offsets = [0, 96], sizes = [2, 32], strides = [1, 1]} : vector<2x128xf32> to vector<2x32xf32>
    %cst_120 = arith.constant 0.000000e+00 : f32
    %316 = vector.broadcast %cst_120 : f32 to vector<2x32xf32>
    %317 = arith.subf %316, %315 : vector<2x32xf32>
    %318 = math.exp %317 : vector<2x32xf32>
    %cst_121 = arith.constant 1.000000e+00 : f32
    %319 = vector.broadcast %cst_121 : f32 to vector<2x32xf32>
    %320 = arith.addf %319, %318 : vector<2x32xf32>
    %cst_122 = arith.constant 1.000000e+00 : f32
    %321 = vector.broadcast %cst_122 : f32 to vector<2x32xf32>
    %322 = arith.divf %321, %320 : vector<2x32xf32>
    %323 = arith.mulf %312, %286 : vector<2x32xf32>
    %324 = arith.mulf %304, %314 : vector<2x32xf32>
    %325 = arith.addf %323, %324 : vector<2x32xf32>
    %326 = math.tanh %325 : vector<2x32xf32>
    %327 = arith.mulf %322, %326 : vector<2x32xf32>
    %c2_i32_123 = arith.constant 2 : i32
    %328 = arith.muli %c7_i32, %c2_i32_123 : i32
    %329 = arith.index_cast %328 : i32 to index
    %c0_124 = arith.constant 0 : index
    %330 = vector.load %arg12[%329, %c0_124] : memref<16x32xf32, #tpu.memory_space<vmem>>, vector<2x32xf32>
    tpu.vector_store %arg12[%329, %c0_124], %327 {strides = array<i32>} : memref<16x32xf32, #tpu.memory_space<vmem>>, vector<2x32xf32>,
    %c8_i32 = arith.constant 8 : i32
    %c0_125 = arith.constant 0 : index
    %c0_126 = arith.constant 0 : index
    %331 = vector.load %arg12[%c0_125, %c0_126] : memref<16x32xf32, #tpu.memory_space<vmem>>, vector<2x32xf32>
    %c14 = arith.constant 14 : index
    %c0_127 = arith.constant 0 : index
    %332 = vector.load %arg12[%c14, %c0_127] : memref<16x32xf32, #tpu.memory_space<vmem>>, vector<2x32xf32>
    %333 = vector.extract_strided_slice %331 {offsets = [0, 0], sizes = [2, 16], strides = [1, 1]} : vector<2x32xf32> to vector<2x16xf32>
    %334 = vector.extract_strided_slice %332 {offsets = [0, 16], sizes = [2, 16], strides = [1, 1]} : vector<2x32xf32> to vector<2x16xf32>
    %335 = tpu.concatenate %333, %334 in 1 : vector<2x16xf32>, vector<2x16xf32> -> vector<2x32xf32>
    %c0_128 = arith.constant 0 : index
    %c0_129 = arith.constant 0 : index
    %c0_130 = arith.constant 0 : index
    %336 = vector.load %arg8[%c0_128, %c0_129, %c0_130] : memref<8x2x32xf32, #tpu.memory_space<vmem>>, vector<1x2x32xf32>
    %337 = vector.shape_cast %336 : vector<1x2x32xf32> to vector<2x32xf32>
    %338 = vector.shape_cast %335 : vector<2x32xf32> to vector<1x2x32xf32>
    tpu.vector_store %arg8[%c0_128, %c0_129, %c0_130], %338 {strides = array<i32>} : memref<8x2x32xf32, #tpu.memory_space<vmem>>, vector<1x2x32xf32>,
    %c2 = arith.constant 2 : index
    %c0_131 = arith.constant 0 : index
    %339 = vector.load %arg12[%c2, %c0_131] : memref<16x32xf32, #tpu.memory_space<vmem>>, vector<2x32xf32>
    %c12 = arith.constant 12 : index
    %c0_132 = arith.constant 0 : index
    %340 = vector.load %arg12[%c12, %c0_132] : memref<16x32xf32, #tpu.memory_space<vmem>>, vector<2x32xf32>
    %341 = vector.extract_strided_slice %339 {offsets = [0, 0], sizes = [2, 16], strides = [1, 1]} : vector<2x32xf32> to vector<2x16xf32>
    %342 = vector.extract_strided_slice %340 {offsets = [0, 16], sizes = [2, 16], strides = [1, 1]} : vector<2x32xf32> to vector<2x16xf32>
    %343 = tpu.concatenate %341, %342 in 1 : vector<2x16xf32>, vector<2x16xf32> -> vector<2x32xf32>
    %c1 = arith.constant 1 : index
    %c0_133 = arith.constant 0 : index
    %c0_134 = arith.constant 0 : index
    %344 = vector.load %arg8[%c1, %c0_133, %c0_134] : memref<8x2x32xf32, #tpu.memory_space<vmem>>, vector<1x2x32xf32>
    %345 = vector.shape_cast %344 : vector<1x2x32xf32> to vector<2x32xf32>
    %346 = vector.shape_cast %343 : vector<2x32xf32> to vector<1x2x32xf32>
    tpu.vector_store %arg8[%c1, %c0_133, %c0_134], %346 {strides = array<i32>} : memref<8x2x32xf32, #tpu.memory_space<vmem>>, vector<1x2x32xf32>,
    %c4 = arith.constant 4 : index
    %c0_135 = arith.constant 0 : index
    %347 = vector.load %arg12[%c4, %c0_135] : memref<16x32xf32, #tpu.memory_space<vmem>>, vector<2x32xf32>
    %c10 = arith.constant 10 : index
    %c0_136 = arith.constant 0 : index
    %348 = vector.load %arg12[%c10, %c0_136] : memref<16x32xf32, #tpu.memory_space<vmem>>, vector<2x32xf32>
    %349 = vector.extract_strided_slice %347 {offsets = [0, 0], sizes = [2, 16], strides = [1, 1]} : vector<2x32xf32> to vector<2x16xf32>
    %350 = vector.extract_strided_slice %348 {offsets = [0, 16], sizes = [2, 16], strides = [1, 1]} : vector<2x32xf32> to vector<2x16xf32>
    %351 = tpu.concatenate %349, %350 in 1 : vector<2x16xf32>, vector<2x16xf32> -> vector<2x32xf32>
    %c2_137 = arith.constant 2 : index
    %c0_138 = arith.constant 0 : index
    %c0_139 = arith.constant 0 : index
    %352 = vector.load %arg8[%c2_137, %c0_138, %c0_139] : memref<8x2x32xf32, #tpu.memory_space<vmem>>, vector<1x2x32xf32>
    %353 = vector.shape_cast %352 : vector<1x2x32xf32> to vector<2x32xf32>
    %354 = vector.shape_cast %351 : vector<2x32xf32> to vector<1x2x32xf32>
    tpu.vector_store %arg8[%c2_137, %c0_138, %c0_139], %354 {strides = array<i32>} : memref<8x2x32xf32, #tpu.memory_space<vmem>>, vector<1x2x32xf32>,
    %c6 = arith.constant 6 : index
    %c0_140 = arith.constant 0 : index
    %355 = vector.load %arg12[%c6, %c0_140] : memref<16x32xf32, #tpu.memory_space<vmem>>, vector<2x32xf32>
    %c8 = arith.constant 8 : index
    %c0_141 = arith.constant 0 : index
    %356 = vector.load %arg12[%c8, %c0_141] : memref<16x32xf32, #tpu.memory_space<vmem>>, vector<2x32xf32>
    %357 = vector.extract_strided_slice %355 {offsets = [0, 0], sizes = [2, 16], strides = [1, 1]} : vector<2x32xf32> to vector<2x16xf32>
    %358 = vector.extract_strided_slice %356 {offsets = [0, 16], sizes = [2, 16], strides = [1, 1]} : vector<2x32xf32> to vector<2x16xf32>
    %359 = tpu.concatenate %357, %358 in 1 : vector<2x16xf32>, vector<2x16xf32> -> vector<2x32xf32>
    %c3 = arith.constant 3 : index
    %c0_142 = arith.constant 0 : index
    %c0_143 = arith.constant 0 : index
    %360 = vector.load %arg8[%c3, %c0_142, %c0_143] : memref<8x2x32xf32, #tpu.memory_space<vmem>>, vector<1x2x32xf32>
    %361 = vector.shape_cast %360 : vector<1x2x32xf32> to vector<2x32xf32>
    %362 = vector.shape_cast %359 : vector<2x32xf32> to vector<1x2x32xf32>
    tpu.vector_store %arg8[%c3, %c0_142, %c0_143], %362 {strides = array<i32>} : memref<8x2x32xf32, #tpu.memory_space<vmem>>, vector<1x2x32xf32>,
    %c8_144 = arith.constant 8 : index
    %c0_145 = arith.constant 0 : index
    %363 = vector.load %arg12[%c8_144, %c0_145] : memref<16x32xf32, #tpu.memory_space<vmem>>, vector<2x32xf32>
    %c6_146 = arith.constant 6 : index
    %c0_147 = arith.constant 0 : index
    %364 = vector.load %arg12[%c6_146, %c0_147] : memref<16x32xf32, #tpu.memory_space<vmem>>, vector<2x32xf32>
    %365 = vector.extract_strided_slice %363 {offsets = [0, 0], sizes = [2, 16], strides = [1, 1]} : vector<2x32xf32> to vector<2x16xf32>
    %366 = vector.extract_strided_slice %364 {offsets = [0, 16], sizes = [2, 16], strides = [1, 1]} : vector<2x32xf32> to vector<2x16xf32>
    %367 = tpu.concatenate %365, %366 in 1 : vector<2x16xf32>, vector<2x16xf32> -> vector<2x32xf32>
    %c4_148 = arith.constant 4 : index
    %c0_149 = arith.constant 0 : index
    %c0_150 = arith.constant 0 : index
    %368 = vector.load %arg8[%c4_148, %c0_149, %c0_150] : memref<8x2x32xf32, #tpu.memory_space<vmem>>, vector<1x2x32xf32>
    %369 = vector.shape_cast %368 : vector<1x2x32xf32> to vector<2x32xf32>
    %370 = vector.shape_cast %367 : vector<2x32xf32> to vector<1x2x32xf32>
    tpu.vector_store %arg8[%c4_148, %c0_149, %c0_150], %370 {strides = array<i32>} : memref<8x2x32xf32, #tpu.memory_space<vmem>>, vector<1x2x32xf32>,
    %c10_151 = arith.constant 10 : index
    %c0_152 = arith.constant 0 : index
    %371 = vector.load %arg12[%c10_151, %c0_152] : memref<16x32xf32, #tpu.memory_space<vmem>>, vector<2x32xf32>
    %c4_153 = arith.constant 4 : index
    %c0_154 = arith.constant 0 : index
    %372 = vector.load %arg12[%c4_153, %c0_154] : memref<16x32xf32, #tpu.memory_space<vmem>>, vector<2x32xf32>
    %373 = vector.extract_strided_slice %371 {offsets = [0, 0], sizes = [2, 16], strides = [1, 1]} : vector<2x32xf32> to vector<2x16xf32>
    %374 = vector.extract_strided_slice %372 {offsets = [0, 16], sizes = [2, 16], strides = [1, 1]} : vector<2x32xf32> to vector<2x16xf32>
    %375 = tpu.concatenate %373, %374 in 1 : vector<2x16xf32>, vector<2x16xf32> -> vector<2x32xf32>
    %c5 = arith.constant 5 : index
    %c0_155 = arith.constant 0 : index
    %c0_156 = arith.constant 0 : index
    %376 = vector.load %arg8[%c5, %c0_155, %c0_156] : memref<8x2x32xf32, #tpu.memory_space<vmem>>, vector<1x2x32xf32>
    %377 = vector.shape_cast %376 : vector<1x2x32xf32> to vector<2x32xf32>
    %378 = vector.shape_cast %375 : vector<2x32xf32> to vector<1x2x32xf32>
    tpu.vector_store %arg8[%c5, %c0_155, %c0_156], %378 {strides = array<i32>} : memref<8x2x32xf32, #tpu.memory_space<vmem>>, vector<1x2x32xf32>,
    %c12_157 = arith.constant 12 : index
    %c0_158 = arith.constant 0 : index
    %379 = vector.load %arg12[%c12_157, %c0_158] : memref<16x32xf32, #tpu.memory_space<vmem>>, vector<2x32xf32>
    %c2_159 = arith.constant 2 : index
    %c0_160 = arith.constant 0 : index
    %380 = vector.load %arg12[%c2_159, %c0_160] : memref<16x32xf32, #tpu.memory_space<vmem>>, vector<2x32xf32>
    %381 = vector.extract_strided_slice %379 {offsets = [0, 0], sizes = [2, 16], strides = [1, 1]} : vector<2x32xf32> to vector<2x16xf32>
    %382 = vector.extract_strided_slice %380 {offsets = [0, 16], sizes = [2, 16], strides = [1, 1]} : vector<2x32xf32> to vector<2x16xf32>
    %383 = tpu.concatenate %381, %382 in 1 : vector<2x16xf32>, vector<2x16xf32> -> vector<2x32xf32>
    %c6_161 = arith.constant 6 : index
    %c0_162 = arith.constant 0 : index
    %c0_163 = arith.constant 0 : index
    %384 = vector.load %arg8[%c6_161, %c0_162, %c0_163] : memref<8x2x32xf32, #tpu.memory_space<vmem>>, vector<1x2x32xf32>
    %385 = vector.shape_cast %384 : vector<1x2x32xf32> to vector<2x32xf32>
    %386 = vector.shape_cast %383 : vector<2x32xf32> to vector<1x2x32xf32>
    tpu.vector_store %arg8[%c6_161, %c0_162, %c0_163], %386 {strides = array<i32>} : memref<8x2x32xf32, #tpu.memory_space<vmem>>, vector<1x2x32xf32>,
    %c14_164 = arith.constant 14 : index
    %c0_165 = arith.constant 0 : index
    %387 = vector.load %arg12[%c14_164, %c0_165] : memref<16x32xf32, #tpu.memory_space<vmem>>, vector<2x32xf32>
    %c0_166 = arith.constant 0 : index
    %c0_167 = arith.constant 0 : index
    %388 = vector.load %arg12[%c0_166, %c0_167] : memref<16x32xf32, #tpu.memory_space<vmem>>, vector<2x32xf32>
    %389 = vector.extract_strided_slice %387 {offsets = [0, 0], sizes = [2, 16], strides = [1, 1]} : vector<2x32xf32> to vector<2x16xf32>
    %390 = vector.extract_strided_slice %388 {offsets = [0, 16], sizes = [2, 16], strides = [1, 1]} : vector<2x32xf32> to vector<2x16xf32>
    %391 = tpu.concatenate %389, %390 in 1 : vector<2x16xf32>, vector<2x16xf32> -> vector<2x32xf32>
    %c7 = arith.constant 7 : index
    %c0_168 = arith.constant 0 : index
    %c0_169 = arith.constant 0 : index
    %392 = vector.load %arg8[%c7, %c0_168, %c0_169] : memref<8x2x32xf32, #tpu.memory_space<vmem>>, vector<1x2x32xf32>
    %393 = vector.shape_cast %392 : vector<1x2x32xf32> to vector<2x32xf32>
    %394 = vector.shape_cast %391 : vector<2x32xf32> to vector<1x2x32xf32>
    tpu.vector_store %arg8[%c7, %c0_168, %c0_169], %394 {strides = array<i32>} : memref<8x2x32xf32, #tpu.memory_space<vmem>>, vector<1x2x32xf32>,
    %395 = vector.extract_strided_slice %325 {offsets = [0, 0], sizes = [2, 16], strides = [1, 1]} : vector<2x32xf32> to vector<2x16xf32>
    %c0_170 = arith.constant 0 : index
    %c0_171 = arith.constant 0 : index
    %c0_172 = arith.constant 0 : index
    %396 = vector.load %arg10[%c0_170, %c0_171, %c0_172] : memref<2x2x16xf32, #tpu.memory_space<vmem>>, vector<1x2x16xf32>
    %397 = vector.shape_cast %396 : vector<1x2x16xf32> to vector<2x16xf32>
    %398 = vector.shape_cast %395 : vector<2x16xf32> to vector<1x2x16xf32>
    tpu.vector_store %arg10[%c0_170, %c0_171, %c0_172], %398 {strides = array<i32>} : memref<2x2x16xf32, #tpu.memory_space<vmem>>, vector<1x2x16xf32>,
    %399 = vector.extract_strided_slice %325 {offsets = [0, 16], sizes = [2, 16], strides = [1, 1]} : vector<2x32xf32> to vector<2x16xf32>
    %c1_173 = arith.constant 1 : index
    %c0_174 = arith.constant 0 : index
    %c0_175 = arith.constant 0 : index
    %400 = vector.load %arg10[%c1_173, %c0_174, %c0_175] : memref<2x2x16xf32, #tpu.memory_space<vmem>>, vector<1x2x16xf32>
    %401 = vector.shape_cast %400 : vector<1x2x16xf32> to vector<2x16xf32>
    %402 = vector.shape_cast %399 : vector<2x16xf32> to vector<1x2x16xf32>
    tpu.vector_store %arg10[%c1_173, %c0_174, %c0_175], %402 {strides = array<i32>} : memref<2x2x16xf32, #tpu.memory_space<vmem>>, vector<1x2x16xf32>,
    %c0_176 = arith.constant 0 : index
    %c0_177 = arith.constant 0 : index
    %403 = vector.load %arg6[%c0_176, %c0_177] : memref<32x32xf32, #tpu.memory_space<vmem>>, vector<32x32xf32>
    %cst_178 = arith.constant dense<0.000000e+00> : vector<2x32xf32>
    %404 = tpu.matmul %327, %403, %cst_178 {dimension_numbers = #tpu.dot_dimension_numbers<[1], [0], [0], [1], [0, 0, 1, 1], [], []>} : vector<2x32xf32>, vector<32x32xf32>, vector<2x32xf32> -> vector<2x32xf32>
    %c0_179 = arith.constant 0 : index
    %c0_180 = arith.constant 0 : index
    %405 = vector.load %arg7[%c0_179, %c0_180] : memref<1x32xf32, #tpu.memory_space<vmem>>, vector<1x32xf32>
    %406 = vector.broadcast %405 : vector<1x32xf32> to vector<2x32xf32>
    %407 = arith.addf %404, %406 : vector<2x32xf32>
    %408 = math.tanh %407 : vector<2x32xf32>
    %c0_181 = arith.constant 0 : index
    %c0_182 = arith.constant 0 : index
    %409 = vector.load %arg9[%c0_181, %c0_182] : memref<2x32xf32, #tpu.memory_space<vmem>>, vector<2x32xf32>
    tpu.vector_store %arg9[%c0_181, %c0_182], %408 {strides = array<i32>} : memref<2x32xf32, #tpu.memory_space<vmem>>, vector<2x32xf32>,
    return
  }
  func.func @transform_0(%arg0: i32) -> (i32, i32) {
    %c0_i32 = arith.constant 0 : i32
    %c0_i32_0 = arith.constant 0 : i32
    %c0_i32_1 = arith.constant 0 : i32
    return %c0_i32, %c0_i32_0 : i32, i32
  }
  func.func @transform_1(%arg0: i32) -> (i32, i32) {
    %c0_i32 = arith.constant 0 : i32
    %c0_i32_0 = arith.constant 0 : i32
    %c0_i32_1 = arith.constant 0 : i32
    return %c0_i32, %c0_i32_0 : i32, i32
  }
  func.func @transform_2(%arg0: i32) -> (i32, i32) {
    %c0_i32 = arith.constant 0 : i32
    %c0_i32_0 = arith.constant 0 : i32
    %c0_i32_1 = arith.constant 0 : i32
    return %c0_i32, %c0_i32_0 : i32, i32
  }
  func.func @transform_3(%arg0: i32) -> (i32, i32) {
    %c0_i32 = arith.constant 0 : i32
    %c0_i32_0 = arith.constant 0 : i32
    %c0_i32_1 = arith.constant 0 : i32
    return %c0_i32, %c0_i32_0 : i32, i32
  }
  func.func @transform_4(%arg0: i32) -> (i32, i32) {
    %c0_i32 = arith.constant 0 : i32
    %c0_i32_0 = arith.constant 0 : i32
    %c0_i32_1 = arith.constant 0 : i32
    return %c0_i32, %c0_i32_0 : i32, i32
  }
  func.func @transform_5(%arg0: i32) -> (i32, i32) {
    %c0_i32 = arith.constant 0 : i32
    %c0_i32_0 = arith.constant 0 : i32
    %c0_i32_1 = arith.constant 0 : i32
    return %c0_i32, %c0_i32_0 : i32, i32
  }
  func.func @transform_6(%arg0: i32) -> (i32, i32) {
    %c0_i32 = arith.constant 0 : i32
    %c0_i32_0 = arith.constant 0 : i32
    %c0_i32_1 = arith.constant 0 : i32
    return %c0_i32, %c0_i32_0 : i32, i32
  }
  func.func @transform_7(%arg0: i32) -> (i32, i32, i32) {
    %c0_i32 = arith.constant 0 : i32
    %c0_i32_0 = arith.constant 0 : i32
    %c0_i32_1 = arith.constant 0 : i32
    %c0_i32_2 = arith.constant 0 : i32
    return %c0_i32, %c0_i32_0, %c0_i32_1 : i32, i32, i32
  }
  func.func @transform_8(%arg0: i32) -> (i32, i32) {
    %c0_i32 = arith.constant 0 : i32
    %c0_i32_0 = arith.constant 0 : i32
    %c0_i32_1 = arith.constant 0 : i32
    return %c0_i32, %c0_i32_0 : i32, i32
  }
  func.func @transform_9(%arg0: i32) -> (i32, i32, i32) {
    %c0_i32 = arith.constant 0 : i32
    %c0_i32_0 = arith.constant 0 : i32
    %c0_i32_1 = arith.constant 0 : i32
    %c0_i32_2 = arith.constant 0 : i32
    return %c0_i32, %c0_i32_0, %c0_i32_1 : i32, i32, i32
  }
}

</mosaic_0001>

<llo_original>
// kernel: encoder_forward.1
$region0: #{encoder_forward.1}
  #allocation0 [shape = 'u32[]', space=smem, size = 0x4, offset = 0x4, fixed_abs, tag = 'smem constant byte address 0x4 - core index']
  #allocation1 [shape = 'u32[144,128]{1,0:T(1,128)}', space=vmem, size = 0x12000, scoped, tag = 'internal scratch']
  #allocation2 [shape = 'f32[16,128]{1,0:T(8,128)}', space=vmem, size = 0x2000, scoped, tag = 'scratch operand']
  #allocation3 [shape = 'f32[16,32]{1,0:T(8,128)}', space=vmem, size = 0x2000, scoped, tag = 'scratch operand']
  %s0 = inlined_call_operand.vmem [shape: s32[32,1], index: 0, kind: input, shape index: {}]
  %s1 = inlined_call_operand.vmem [shape: f32[100,32], index: 1, kind: input, shape index: {}]
  %s2 = inlined_call_operand.vmem [shape: f32[64,128], index: 2, kind: input, shape index: {}]
  %s3 = inlined_call_operand.vmem [shape: f32[1,128], index: 3, kind: input, shape index: {}]
  %s4 = inlined_call_operand.vmem [shape: f32[32,128], index: 4, kind: input, shape index: {}]
  %s5 = inlined_call_operand.vmem [shape: f32[32,32], index: 5, kind: input, shape index: {}]
  %s6 = inlined_call_operand.vmem [shape: f32[1,32], index: 6, kind: input, shape index: {}]
  %s7 = inlined_call_operand.hbm [shape: f32[8,2,32], index: 7, kind: output, shape index: {0}]
  %s8 = inlined_call_operand.hbm [shape: f32[2,32], index: 8, kind: output, shape index: {1}]
  %s9 = inlined_call_operand.hbm [shape: f32[2,2,16], index: 9, kind: output, shape index: {2}]
  %10 = xla_tuple %s7, %s8, %s9
  %s11 = sld [smem:[#allocation0]]
  $region54: #{encoder_forward.1} parent=0
    _
  %s13 = ssub.s32 1, %s11
  %s14 = scalar_select 0, %s13, %s11
  $region1: #{encoder_forward.1} parent=0
    #allocation4 [shape = 'u8[8192]{0}', space=vmem, size = 0x2000, scoped, tag = 'output window, operand 0, single buffered']
    #allocation5 [shape = 's32[1]{0}', space=sflag, size = 0x4, scoped, tag = 'scoped memory for encoder_forward.1']
    #allocation6 [shape = 'u8[1024]{0}', space=vmem, size = 0x400, scoped, tag = 'output window, operand 1, single buffered']
    #allocation7 [shape = 's32[1]{0}', space=sflag, size = 0x4, scoped, tag = 'scoped memory for encoder_forward.1']
    #allocation8 [shape = 'u8[2048]{0}', space=vmem, size = 0x800, scoped, tag = 'output window, operand 2, single buffered']
    %15 = vsyncpa [#allocation5], 0
    %16 = vsyncpa [#allocation7], 0
    // Predicated region
    $region2: #{encoder_forward.1} parent=1 // pred_check
      _
    $region3: #{encoder_forward.1} parent=1 // pred_check_branch
      %18 = sbr.rel (0) target = $region5
    $region4: #{encoder_forward.1} parent=1 // pred_region
      _
    $region5: #{encoder_forward.1} parent=1 // pred_fallthru
      _
    // Predicated region
    $region6: #{encoder_forward.1} parent=1 // pred_check
      _
    $region7: #{encoder_forward.1} parent=1 // pred_check_branch
      %20 = sbr.rel (0) target = $region9
    $region8: #{encoder_forward.1} parent=1 // pred_region
      _
    $region9: #{encoder_forward.1} parent=1 // pred_fallthru
      _
    // Predicated region
    $region10: #{encoder_forward.1} parent=1 // pred_check
      _
    $region11: #{encoder_forward.1} parent=1 // pred_check_branch
      %22 = sbr.rel (0) target = $region13
    $region12: #{encoder_forward.1} parent=1 // pred_region
      _
    $region13: #{encoder_forward.1} parent=1 // pred_fallthru
      _
    // Predicated region
    $region14: #{encoder_forward.1} parent=1 // pred_check
      _
    $region15: #{encoder_forward.1} parent=1 // pred_check_branch
      %24 = sbr.rel (0) target = $region17
    $region16: #{encoder_forward.1} parent=1 // pred_region
      _
    $region17: #{encoder_forward.1} parent=1 // pred_fallthru
      _
    // Predicated region
    $region18: #{encoder_forward.1} parent=1 // pred_check
      _
    $region19: #{encoder_forward.1} parent=1 // pred_check_branch
      %26 = sbr.rel (0) target = $region21
    $region20: #{encoder_forward.1} parent=1 // pred_region
      _
    $region21: #{encoder_forward.1} parent=1 // pred_fallthru
      _
    // Predicated region
    $region22: #{encoder_forward.1} parent=1 // pred_check
      _
    $region23: #{encoder_forward.1} parent=1 // pred_check_branch
      %28 = sbr.rel (0) target = $region25
    $region24: #{encoder_forward.1} parent=1 // pred_region
      _
    $region25: #{encoder_forward.1} parent=1 // pred_fallthru
      _
    // Predicated region
    $region26: #{encoder_forward.1} parent=1 // pred_check
      _
    $region27: #{encoder_forward.1} parent=1 // pred_check_branch
      %30 = sbr.rel (0) target = $region29
    $region28: #{encoder_forward.1} parent=1 // pred_region
      _
    $region29: #{encoder_forward.1} parent=1 // pred_fallthru
      _
    %v31 = vld [vmem:[%s0] sm:$0xff]
    %v32 = vld [vmem:[%s0 + $0x8] sm:$0xff]
    %v33 = vld [vmem:[%s0 + $0x10] sm:$0xff]
    %v34 = vld [vmem:[%s0 + $0x18] sm:$0xff]
    %v35 = vlaneseq
    %v36 = vand.u32 %v35, 127
    %37 = vset.pattern.permute.xlu0 0
    %38 = vperm.xlu0 %37, %v31
    %v39 = vpop.permute.xlu0 %38
    %40 = vset.pattern.permute.xlu0 0
    %41 = vperm.xlu0 %40, %v32
    %v42 = vpop.permute.xlu0 %41
    %43 = vset.pattern.permute.xlu0 0
    %44 = vperm.xlu0 %43, %v33
    %v45 = vpop.permute.xlu0 %44
    %46 = vset.pattern.permute.xlu0 0
    %47 = vperm.xlu0 %46, %v34
    %v48 = vpop.permute.xlu0 %47
    %vm49 = vcmp.eq.s32.totalorder %v36, %v39
    %vm50 = vcmp.eq.s32.totalorder %v36, %v42
    %vm51 = vcmp.eq.s32.totalorder %v36, %v45
    %vm52 = vcmp.eq.s32.totalorder %v36, %v48
    %v53 = vsel %vm49, 1, 0
    %v54 = vsel %vm50, 1, 0
    %v55 = vsel %vm51, 1, 0
    %v56 = vsel %vm52, 1, 0
    %v57 = vcvt.s32.f32 %v53
    %v58 = vcvt.s32.f32 %v54
    %v59 = vcvt.s32.f32 %v55
    %v60 = vcvt.s32.f32 %v56
    %v61 = vld [vmem:[%s1] sm:$0xff]
    %v62 = vld [vmem:[%s1 + $0x8] sm:$0xff]
    %v63 = vld [vmem:[%s1 + $0x10] sm:$0xff]
    %v64 = vld [vmem:[%s1 + $0x18] sm:$0xff]
    %v65 = vld [vmem:[%s1 + $0x20] sm:$0xff]
    %v66 = vld [vmem:[%s1 + $0x28] sm:$0xff]
    %v67 = vld [vmem:[%s1 + $0x30] sm:$0xff]
    %v68 = vld [vmem:[%s1 + $0x38] sm:$0xff]
    %v69 = vld [vmem:[%s1 + $0x40] sm:$0xff]
    %v70 = vld [vmem:[%s1 + $0x48] sm:$0xff]
    %v71 = vld [vmem:[%s1 + $0x50] sm:$0xff]
    %v72 = vld [vmem:[%s1 + $0x58] sm:$0xff]
    %v73 = vld [vmem:[%s1 + $0x60] sm:$0xf]
    %vm74 = vcmask 818176
    %v76 = vsel %vm74, %v57, 0
    %v79 = vsel %vm74, %v58, 0
    %v82 = vsel %vm74, %v59, 0
    %v85 = vsel %vm74, %v60, 0
    %vm87 = vcmask 1043456
    %v89 = vsel %vm87, %v73, 0
    %91 = vmatprep.subr.mxu0 0.0
    %92 = vmatpush1.msra.mxu0 %v61
    %93 = vmatprep.subr.mxu0 0.0
    %94 = vmatpush1.msra.mxu0 %v62
    %95 = vmatprep.subr.mxu0 0.0
    %96 = vmatpush1.msra.mxu0 %v63
    %97 = vmatprep.subr.mxu0 0.0
    %98 = vmatpush1.msra.mxu0 %v64
    %99 = vmatprep.subr.mxu0 0.0
    %100 = vmatpush1.msra.mxu0 %v65
    %101 = vmatprep.subr.mxu0 0.0
    %102 = vmatpush1.msra.mxu0 %v66
    %103 = vmatprep.subr.mxu0 0.0
    %104 = vmatpush1.msra.mxu0 %v67
    %105 = vmatprep.subr.mxu0 0.0
    %106 = vmatpush1.msra.mxu0 %v68
    %107 = vmatprep.subr.mxu0 0.0
    %108 = vmatpush1.msra.mxu0 %v69
    %109 = vmatprep.subr.mxu0 0.0
    %110 = vmatpush1.msra.mxu0 %v70
    %111 = vmatprep.subr.mxu0 0.0
    %112 = vmatpush1.msra.mxu0 %v71
    %113 = vmatprep.subr.mxu0 0.0
    %114 = vmatpush1.msra.mxu0 %v72
    %115 = vmatprep.subr.mxu0 0.0
    %116 = vmatpush1.msra.mxu0 %v89
    %117 = vmatprep.subr.mxu0 0.0
    %118 = vmatpush1.msra.mxu0 0.0
    %119 = vmatprep.subr.mxu0 0.0
    %120 = vmatpush1.msra.mxu0 0.0
    %121 = vmatprep.subr.mxu0 0.0
    %122 = vmatpush1.msra.mxu0 0.0
    %123 = vmatprep.subr.mxu0 0.0
    %124 = vmatpush1.msra.mxu0 0.0
    %125 = vmatprep.subr.mxu0 0.0
    %126 = vmatpush1.msra.mxu0 0.0
    %127 = vmatprep.subr.mxu0 0.0
    %128 = vmatpush1.msra.mxu0 0.0
    %129 = vmatprep.subr.mxu0 0.0
    %130 = vmatpush1.msra.mxu0 0.0
    %131 = vmatprep.subr.mxu0 0.0
    %132 = vmatpush1.msra.mxu0 0.0
    %133 = vmatprep.subr.mxu0 0.0
    %134 = vmatpush1.msra.mxu0 0.0
    %135 = vmatprep.subr.mxu0 0.0
    %136 = vmatpush1.msra.mxu0 0.0
    %137 = vmatprep.subr.mxu0 0.0
    %138 = vmatpush1.msra.mxu0 0.0
    %139 = vmatprep.subr.mxu0 0.0
    %140 = vmatpush1.msra.mxu0 0.0
    %141 = vmatprep.subr.mxu0 0.0
    %142 = vmatpush1.msra.mxu0 0.0
    %143 = vmatprep.subr.mxu0 0.0
    %144 = vmatpush1.msra.mxu0 0.0
    %145 = vmatprep.subr.mxu0 0.0
    %146 = vmatpush1.msra.mxu0 0.0
    %147 = vmatprep.subr.mxu0 0.0
    %148 = vmatpush1.msra.mxu0 0.0
    %149 = vmatprep.subr.mxu0 0.0
    %150 = vmatpush1.msra.mxu0 0.0
    %151 = vmatprep.subr.mxu0 0.0
    %152 = vmatpush1.msra.mxu0 0.0
    %153 = vmatprep.subr.mxu0 0.0
    %154 = vmatpush1.msra.mxu0 0.0
    %155 = vmatprep.mubr.f32.mxu0 0.0
    %156 = vmatmul.mubr.f32.gmra.mrb[0].mxu0 %v76
    %v157 = vpop.f32.mrb[0].mxu0
    %v158 = vadd.f32 0.0, %v157
    %v159 = vpop.f32.mrb[0].mxu0
    %160 = vmatprep.mubr.f32.mxu0 0.0
    %161 = vmatmul.mubr.f32.gmra.mrb[0].mxu0 %v79
    %v162 = vpop.f32.mrb[0].mxu0
    %v163 = vadd.f32 0.0, %v162
    %v164 = vpop.f32.mrb[0].mxu0
    %165 = vmatprep.mubr.f32.mxu0 0.0
    %166 = vmatmul.mubr.f32.gmra.mrb[0].mxu0 %v82
    %v167 = vpop.f32.mrb[0].mxu0
    %v168 = vadd.f32 0.0, %v167
    %v169 = vpop.f32.mrb[0].mxu0
    %170 = vmatprep.mubr.f32.mxu0 0.0
    %171 = vmatmul.mubr.f32.gmra.mrb[0].mxu0 %v85
    %v172 = vpop.f32.mrb[0].mxu0
    %v173 = vadd.f32 0.0, %v172
    %v174 = vpop.f32.mrb[0].mxu0
    %175 = vdwg.mxu0
    %178 = vrot.lane.b32.xlu0 %v168, 32
    %v179 = vpop.permute.xlu0 %178
    %180 = vrot.lane.b32.xlu0 %v173, 32
    %v181 = vpop.permute.xlu0 %180
    %vm184 = vcmask 261120
    %v185 = vsel %vm184, %v158, %v179
    %v186 = vsel %vm184, %v163, %v181
    %v187 = vld [vmem:[%s2] sm:$0xff]
    %v188 = vld [vmem:[%s2 + $0x8] sm:$0xff]
    %v189 = vld [vmem:[%s2 + $0x10] sm:$0xff]
    %v190 = vld [vmem:[%s2 + $0x18] sm:$0xff]
    %v191 = vld [vmem:[%s2 + $0x20] sm:$0xff]
    %v192 = vld [vmem:[%s2 + $0x28] sm:$0xff]
    %v193 = vld [vmem:[%s2 + $0x30] sm:$0xff]
    %v194 = vld [vmem:[%s2 + $0x38] sm:$0xff]
    %v195 = vld [vmem:[%s3] sm:$0x1]
    %v197 = vlaneseq
    %v198 = vshrl.u32 %v197, 7
    %v199 = vsub.s32 0, %v198
    %v200 = vrot.slane %v195, %v199
    %vm202 = vcmask 523264
    %v204 = vsel %vm202, %v185, 0
    %v207 = vsel %vm202, %v186, 0
    %209 = vmatprep.subr.mxu0 0.0
    %210 = vmatpush1.msra.mxu0 %v187
    %211 = vmatprep.subr.mxu0 0.0
    %212 = vmatpush1.msra.mxu0 %v188
    %213 = vmatprep.subr.mxu0 0.0
    %214 = vmatpush1.msra.mxu0 %v189
    %215 = vmatprep.subr.mxu0 0.0
    %216 = vmatpush1.msra.mxu0 %v190
    %217 = vmatprep.subr.mxu0 0.0
    %218 = vmatpush1.msra.mxu0 %v191
    %219 = vmatprep.subr.mxu0 0.0
    %220 = vmatpush1.msra.mxu0 %v192
    %221 = vmatprep.subr.mxu0 0.0
    %222 = vmatpush1.msra.mxu0 %v193
    %223 = vmatprep.subr.mxu0 0.0
    %224 = vmatpush1.msra.mxu0 %v194
    %225 = vmatprep.subr.mxu0 0.0
    %226 = vmatpush1.msra.mxu0 0.0
    %227 = vmatprep.subr.mxu0 0.0
    %228 = vmatpush1.msra.mxu0 0.0
    %229 = vmatprep.subr.mxu0 0.0
    %230 = vmatpush1.msra.mxu0 0.0
    %231 = vmatprep.subr.mxu0 0.0
    %232 = vmatpush1.msra.mxu0 0.0
    %233 = vmatprep.subr.mxu0 0.0
    %234 = vmatpush1.msra.mxu0 0.0
    %235 = vmatprep.subr.mxu0 0.0
    %236 = vmatpush1.msra.mxu0 0.0
    %237 = vmatprep.subr.mxu0 0.0
    %238 = vmatpush1.msra.mxu0 0.0
    %239 = vmatprep.subr.mxu0 0.0
    %240 = vmatpush1.msra.mxu0 0.0
    %241 = vmatprep.subr.mxu0 0.0
    %242 = vmatpush1.msra.mxu0 0.0
    %243 = vmatprep.subr.mxu0 0.0
    %244 = vmatpush1.msra.mxu0 0.0
    %245 = vmatprep.subr.mxu0 0.0
    %246 = vmatpush1.msra.mxu0 0.0
    %247 = vmatprep.subr.mxu0 0.0
    %248 = vmatpush1.msra.mxu0 0.0
    %249 = vmatprep.subr.mxu0 0.0
    %250 = vmatpush1.msra.mxu0 0.0
    %251 = vmatprep.subr.mxu0 0.0
    %252 = vmatpush1.msra.mxu0 0.0
    %253 = vmatprep.subr.mxu0 0.0
    %254 = vmatpush1.msra.mxu0 0.0
    %255 = vmatprep.subr.mxu0 0.0
    %256 = vmatpush1.msra.mxu0 0.0
    %257 = vmatprep.subr.mxu0 0.0
    %258 = vmatpush1.msra.mxu0 0.0
    %259 = vmatprep.subr.mxu0 0.0
    %260 = vmatpush1.msra.mxu0 0.0
    %261 = vmatprep.subr.mxu0 0.0
    %262 = vmatpush1.msra.mxu0 0.0
    %263 = vmatprep.subr.mxu0 0.0
    %264 = vmatpush1.msra.mxu0 0.0
    %265 = vmatprep.subr.mxu0 0.0
    %266 = vmatpush1.msra.mxu0 0.0
    %267 = vmatprep.subr.mxu0 0.0
    %268 = vmatpush1.msra.mxu0 0.0
    %269 = vmatprep.subr.mxu0 0.0
    %270 = vmatpush1.msra.mxu0 0.0
    %271 = vmatprep.subr.mxu0 0.0
    %272 = vmatpush1.msra.mxu0 0.0
    %273 = vmatprep.mubr.f32.mxu0 0.0
    %274 = vmatmul.mubr.f32.gmra.mrb[0].mxu0 %v204
    %v275 = vpop.f32.mrb[0].mxu0
    %v276 = vadd.f32 %v200, %v275
    %v277 = vpop.f32.mrb[0].mxu0
    %278 = vmatprep.mubr.f32.mxu0 0.0
    %279 = vmatmul.mubr.f32.gmra.mrb[0].mxu0 %v207
    %v280 = vpop.f32.mrb[0].mxu0
    %v281 = vadd.f32 %v200, %v280
    %v282 = vpop.f32.mrb[0].mxu0
    %283 = vdwg.mxu0
    %284 = vst [vmem:[#allocation2] sm:$0xff] %v276
    %285 = vst [vmem:[#allocation2 + $0x8] sm:$0xff] %v281
    %v286 = vld [vmem:[%s4] sm:$0xff]
    %v287 = vld [vmem:[%s4 + $0x8] sm:$0xff]
    %v288 = vld [vmem:[%s4 + $0x10] sm:$0xff]
    %v289 = vld [vmem:[%s4 + $0x18] sm:$0xff]
    %v290 = vld [vmem:[#allocation2] sm:$0x3]
    %v292 = vsel %vm184, 0.0, 0
    %294 = vmatprep.subr.mxu0 0.0
    %295 = vmatpush1.msra.mxu0 %v286
    %296 = vmatprep.subr.mxu0 0.0
    %297 = vmatpush1.msra.mxu0 %v287
    %298 = vmatprep.subr.mxu0 0.0
    %299 = vmatpush1.msra.mxu0 %v288
    %300 = vmatprep.subr.mxu0 0.0
    %301 = vmatpush1.msra.mxu0 %v289
    %302 = vmatprep.subr.mxu0 0.0
    %303 = vmatpush1.msra.mxu0 0.0
    %304 = vmatprep.subr.mxu0 0.0
    %305 = vmatpush1.msra.mxu0 0.0
    %306 = vmatprep.subr.mxu0 0.0
    %307 = vmatpush1.msra.mxu0 0.0
    %308 = vmatprep.subr.mxu0 0.0
    %309 = vmatpush1.msra.mxu0 0.0
    %310 = vmatprep.subr.mxu0 0.0
    %311 = vmatpush1.msra.mxu0 0.0
    %312 = vmatprep.subr.mxu0 0.0
    %313 = vmatpush1.msra.mxu0 0.0
    %314 = vmatprep.subr.mxu0 0.0
    %315 = vmatpush1.msra.mxu0 0.0
    %316 = vmatprep.subr.mxu0 0.0
    %317 = vmatpush1.msra.mxu0 0.0
    %318 = vmatprep.subr.mxu0 0.0
    %319 = vmatpush1.msra.mxu0 0.0
    %320 = vmatprep.subr.mxu0 0.0
    %321 = vmatpush1.msra.mxu0 0.0
    %322 = vmatprep.subr.mxu0 0.0
    %323 = vmatpush1.msra.mxu0 0.0
    %324 = vmatprep.subr.mxu0 0.0
    %325 = vmatpush1.msra.mxu0 0.0
    %326 = vmatprep.subr.mxu0 0.0
    %327 = vmatpush1.msra.mxu0 0.0
    %328 = vmatprep.subr.mxu0 0.0
    %329 = vmatpush1.msra.mxu0 0.0
    %330 = vmatprep.subr.mxu0 0.0
    %331 = vmatpush1.msra.mxu0 0.0
    %332 = vmatprep.subr.mxu0 0.0
    %333 = vmatpush1.msra.mxu0 0.0
    %334 = vmatprep.subr.mxu0 0.0
    %335 = vmatpush1.msra.mxu0 0.0
    %336 = vmatprep.subr.mxu0 0.0
    %337 = vmatpush1.msra.mxu0 0.0
    %338 = vmatprep.subr.mxu0 0.0
    %339 = vmatpush1.msra.mxu0 0.0
    %340 = vmatprep.subr.mxu0 0.0
    %341 = vmatpush1.msra.mxu0 0.0
    %342 = vmatprep.subr.mxu0 0.0
    %343 = vmatpush1.msra.mxu0 0.0
    %344 = vmatprep.subr.mxu0 0.0
    %345 = vmatpush1.msra.mxu0 0.0
    %346 = vmatprep.subr.mxu0 0.0
    %347 = vmatpush1.msra.mxu0 0.0
    %348 = vmatprep.subr.mxu0 0.0
    %349 = vmatpush1.msra.mxu0 0.0
    %350 = vmatprep.subr.mxu0 0.0
    %351 = vmatpush1.msra.mxu0 0.0
    %352 = vmatprep.subr.mxu0 0.0
    %353 = vmatpush1.msra.mxu0 0.0
    %354 = vmatprep.subr.mxu0 0.0
    %355 = vmatpush1.msra.mxu0 0.0
    %356 = vmatprep.subr.mxu0 0.0
    %357 = vmatpush1.msra.mxu0 0.0
    %358 = vmatprep.mubr.f32.mxu0 0.0
    %359 = vmatmul.mubr.f32.gmra.mrb[0].mxu0 %v292
    %v360 = vpop.f32.mrb[0].mxu0
    %v361 = vadd.f32 0.0, %v360
    %v362 = vpop.f32.mrb[0].mxu0
    %363 = vdwg.mxu0
    %v364 = vadd.f32 %v290, %v361
    %v365 = vsub.f32 0.0, %v364
    %v366 = vmul.f32 %v365, 1.442695
    %v367 = vpow.pop %v366
    %v368 = vadd.f32 %v367, 1.0
    %v369 = vrcp.pop %v368
    %v370 = vmul.f32 1.0, %v369
    %v371 = vtanh.pop %v364
    %v372 = vmul.f32 %v370, 0.0
    %374 = vrot.lane.b32.xlu0 %v371, 64
    %v375 = vpop.permute.xlu0 %374
    %v377 = vmul.f32 %v370, %v375
    %379 = vrot.lane.b32.xlu0 %v377, 32
    %v380 = vpop.permute.xlu0 %379
    %v382 = vadd.f32 %v372, %v380
    %v383 = vtanh.pop %v382
    %385 = vrot.lane.b32.xlu0 %v383, 64
    %v386 = vpop.permute.xlu0 %385
    %v388 = vmul.f32 %v370, %v386
    %390 = vrot.lane.b32.xlu0 %v388, 32
    %v391 = vpop.permute.xlu0 %390
    %vm393 = vcmask 254976
    %394 = vst.msk [vmem:[#allocation3] sm:$0x3] %vm393, %v391
    %v395 = vld [vmem:[#allocation2 + $0x2] sm:$0x3]
    %v396 = vsel %vm184, %v391, 0
    %398 = vmatprep.subr.mxu0 0.0
    %399 = vmatpush1.msra.mxu0 %v286
    %400 = vmatprep.subr.mxu0 0.0
    %401 = vmatpush1.msra.mxu0 %v287
    %402 = vmatprep.subr.mxu0 0.0
    %403 = vmatpush1.msra.mxu0 %v288
    %404 = vmatprep.subr.mxu0 0.0
    %405 = vmatpush1.msra.mxu0 %v289
    %406 = vmatprep.subr.mxu0 0.0
    %407 = vmatpush1.msra.mxu0 0.0
    %408 = vmatprep.subr.mxu0 0.0
    %409 = vmatpush1.msra.mxu0 0.0
    %410 = vmatprep.subr.mxu0 0.0
    %411 = vmatpush1.msra.mxu0 0.0
    %412 = vmatprep.subr.mxu0 0.0
    %413 = vmatpush1.msra.mxu0 0.0
    %414 = vmatprep.subr.mxu0 0.0
    %415 = vmatpush1.msra.mxu0 0.0
    %416 = vmatprep.subr.mxu0 0.0
    %417 = vmatpush1.msra.mxu0 0.0
    %418 = vmatprep.subr.mxu0 0.0
    %419 = vmatpush1.msra.mxu0 0.0
    %420 = vmatprep.subr.mxu0 0.0
    %421 = vmatpush1.msra.mxu0 0.0
    %422 = vmatprep.subr.mxu0 0.0
    %423 = vmatpush1.msra.mxu0 0.0
    %424 = vmatprep.subr.mxu0 0.0
    %425 = vmatpush1.msra.mxu0 0.0
    %426 = vmatprep.subr.mxu0 0.0
    %427 = vmatpush1.msra.mxu0 0.0
    %428 = vmatprep.subr.mxu0 0.0
    %429 = vmatpush1.msra.mxu0 0.0
    %430 = vmatprep.subr.mxu0 0.0
    %431 = vmatpush1.msra.mxu0 0.0
    %432 = vmatprep.subr.mxu0 0.0
    %433 = vmatpush1.msra.mxu0 0.0
    %434 = vmatprep.subr.mxu0 0.0
    %435 = vmatpush1.msra.mxu0 0.0
    %436 = vmatprep.subr.mxu0 0.0
    %437 = vmatpush1.msra.mxu0 0.0
    %438 = vmatprep.subr.mxu0 0.0
    %439 = vmatpush1.msra.mxu0 0.0
    %440 = vmatprep.subr.mxu0 0.0
    %441 = vmatpush1.msra.mxu0 0.0
    %442 = vmatprep.subr.mxu0 0.0
    %443 = vmatpush1.msra.mxu0 0.0
    %444 = vmatprep.subr.mxu0 0.0
    %445 = vmatpush1.msra.mxu0 0.0
    %446 = vmatprep.subr.mxu0 0.0
    %447 = vmatpush1.msra.mxu0 0.0
    %448 = vmatprep.subr.mxu0 0.0
    %449 = vmatpush1.msra.mxu0 0.0
    %450 = vmatprep.subr.mxu0 0.0
    %451 = vmatpush1.msra.mxu0 0.0
    %452 = vmatprep.subr.mxu0 0.0
    %453 = vmatpush1.msra.mxu0 0.0
    %454 = vmatprep.subr.mxu0 0.0
    %455 = vmatpush1.msra.mxu0 0.0
    %456 = vmatprep.subr.mxu0 0.0
    %457 = vmatpush1.msra.mxu0 0.0
    %458 = vmatprep.subr.mxu0 0.0
    %459 = vmatpush1.msra.mxu0 0.0
    %460 = vmatprep.subr.mxu0 0.0
    %461 = vmatpush1.msra.mxu0 0.0
    %462 = vmatprep.mubr.f32.mxu0 0.0
    %463 = vmatmul.mubr.f32.gmra.mrb[0].mxu0 %v396
    %v464 = vpop.f32.mrb[0].mxu0
    %v465 = vadd.f32 0.0, %v464
    %v466 = vpop.f32.mrb[0].mxu0
    %467 = vdwg.mxu0
    %v468 = vadd.f32 %v395, %v465
    %v469 = vsub.f32 0.0, %v468
    %v470 = vmul.f32 %v469, 1.442695
    %v471 = vpow.pop %v470
    %v472 = vadd.f32 %v471, 1.0
    %v473 = vrcp.pop %v472
    %v474 = vmul.f32 1.0, %v473
    %v475 = vtanh.pop %v468
    %v476 = vmul.f32 %v474, %v382
    %478 = vrot.lane.b32.xlu0 %v475, 64
    %v479 = vpop.permute.xlu0 %478
    %v481 = vmul.f32 %v474, %v479
    %483 = vrot.lane.b32.xlu0 %v481, 32
    %v484 = vpop.permute.xlu0 %483
    %v486 = vadd.f32 %v476, %v484
    %v487 = vtanh.pop %v486
    %489 = vrot.lane.b32.xlu0 %v487, 64
    %v490 = vpop.permute.xlu0 %489
    %v492 = vmul.f32 %v474, %v490
    %494 = vrot.lane.b32.xlu0 %v492, 32
    %v495 = vpop.permute.xlu0 %494
    %497 = vst.msk [vmem:[#allocation3 + $0x2] sm:$0x3] %vm393, %v495
    %v498 = vld [vmem:[#allocation2 + $0x4] sm:$0x3]
    %v499 = vsel %vm184, %v495, 0
    %501 = vmatprep.subr.mxu0 0.0
    %502 = vmatpush1.msra.mxu0 %v286
    %503 = vmatprep.subr.mxu0 0.0
    %504 = vmatpush1.msra.mxu0 %v287
    %505 = vmatprep.subr.mxu0 0.0
    %506 = vmatpush1.msra.mxu0 %v288
    %507 = vmatprep.subr.mxu0 0.0
    %508 = vmatpush1.msra.mxu0 %v289
    %509 = vmatprep.subr.mxu0 0.0
    %510 = vmatpush1.msra.mxu0 0.0
    %511 = vmatprep.subr.mxu0 0.0
    %512 = vmatpush1.msra.mxu0 0.0
    %513 = vmatprep.subr.mxu0 0.0
    %514 = vmatpush1.msra.mxu0 0.0
    %515 = vmatprep.subr.mxu0 0.0
    %516 = vmatpush1.msra.mxu0 0.0
    %517 = vmatprep.subr.mxu0 0.0
    %518 = vmatpush1.msra.mxu0 0.0
    %519 = vmatprep.subr.mxu0 0.0
    %520 = vmatpush1.msra.mxu0 0.0
    %521 = vmatprep.subr.mxu0 0.0
    %522 = vmatpush1.msra.mxu0 0.0
    %523 = vmatprep.subr.mxu0 0.0
    %524 = vmatpush1.msra.mxu0 0.0
    %525 = vmatprep.subr.mxu0 0.0
    %526 = vmatpush1.msra.mxu0 0.0
    %527 = vmatprep.subr.mxu0 0.0
    %528 = vmatpush1.msra.mxu0 0.0
    %529 = vmatprep.subr.mxu0 0.0
    %530 = vmatpush1.msra.mxu0 0.0
    %531 = vmatprep.subr.mxu0 0.0
    %532 = vmatpush1.msra.mxu0 0.0
    %533 = vmatprep.subr.mxu0 0.0
    %534 = vmatpush1.msra.mxu0 0.0
    %535 = vmatprep.subr.mxu0 0.0
    %536 = vmatpush1.msra.mxu0 0.0
    %537 = vmatprep.subr.mxu0 0.0
    %538 = vmatpush1.msra.mxu0 0.0
    %539 = vmatprep.subr.mxu0 0.0
    %540 = vmatpush1.msra.mxu0 0.0
    %541 = vmatprep.subr.mxu0 0.0
    %542 = vmatpush1.msra.mxu0 0.0
    %543 = vmatprep.subr.mxu0 0.0
    %544 = vmatpush1.msra.mxu0 0.0
    %545 = vmatprep.subr.mxu0 0.0
    %546 = vmatpush1.msra.mxu0 0.0
    %547 = vmatprep.subr.mxu0 0.0
    %548 = vmatpush1.msra.mxu0 0.0
    %549 = vmatprep.subr.mxu0 0.0
    %550 = vmatpush1.msra.mxu0 0.0
    %551 = vmatprep.subr.mxu0 0.0
    %552 = vmatpush1.msra.mxu0 0.0
    %553 = vmatprep.subr.mxu0 0.0
    %554 = vmatpush1.msra.mxu0 0.0
    %555 = vmatprep.subr.mxu0 0.0
    %556 = vmatpush1.msra.mxu0 0.0
    %557 = vmatprep.subr.mxu0 0.0
    %558 = vmatpush1.msra.mxu0 0.0
    %559 = vmatprep.subr.mxu0 0.0
    %560 = vmatpush1.msra.mxu0 0.0
    %561 = vmatprep.subr.mxu0 0.0
    %562 = vmatpush1.msra.mxu0 0.0
    %563 = vmatprep.subr.mxu0 0.0
    %564 = vmatpush1.msra.mxu0 0.0
    %565 = vmatprep.mubr.f32.mxu0 0.0
    %566 = vmatmul.mubr.f32.gmra.mrb[0].mxu0 %v499
    %v567 = vpop.f32.mrb[0].mxu0
    %v568 = vadd.f32 0.0, %v567
    %v569 = vpop.f32.mrb[0].mxu0
    %570 = vdwg.mxu0
    %v571 = vadd.f32 %v498, %v568
    %v572 = vsub.f32 0.0, %v571
    %v573 = vmul.f32 %v572, 1.442695
    %v574 = vpow.pop %v573
    %v575 = vadd.f32 %v574, 1.0
    %v576 = vrcp.pop %v575
    %v577 = vmul.f32 1.0, %v576
    %v578 = vtanh.pop %v571
    %v579 = vmul.f32 %v577, %v486
    %581 = vrot.lane.b32.xlu0 %v578, 64
    %v582 = vpop.permute.xlu0 %581
    %v584 = vmul.f32 %v577, %v582
    %586 = vrot.lane.b32.xlu0 %v584, 32
    %v587 = vpop.permute.xlu0 %586
    %v589 = vadd.f32 %v579, %v587
    %v590 = vtanh.pop %v589
    %592 = vrot.lane.b32.xlu0 %v590, 64
    %v593 = vpop.permute.xlu0 %592
    %v595 = vmul.f32 %v577, %v593
    %597 = vrot.lane.b32.xlu0 %v595, 32
    %v598 = vpop.permute.xlu0 %597
    %600 = vst.msk [vmem:[#allocation3 + $0x4] sm:$0x3] %vm393, %v598
    %v601 = vld [vmem:[#allocation2 + $0x6] sm:$0x3]
    %v602 = vsel %vm184, %v598, 0
    %604 = vmatprep.subr.mxu0 0.0
    %605 = vmatpush1.msra.mxu0 %v286
    %606 = vmatprep.subr.mxu0 0.0
    %607 = vmatpush1.msra.mxu0 %v287
    %608 = vmatprep.subr.mxu0 0.0
    %609 = vmatpush1.msra.mxu0 %v288
    %610 = vmatprep.subr.mxu0 0.0
    %611 = vmatpush1.msra.mxu0 %v289
    %612 = vmatprep.subr.mxu0 0.0
    %613 = vmatpush1.msra.mxu0 0.0
    %614 = vmatprep.subr.mxu0 0.0
    %615 = vmatpush1.msra.mxu0 0.0
    %616 = vmatprep.subr.mxu0 0.0
    %617 = vmatpush1.msra.mxu0 0.0
    %618 = vmatprep.subr.mxu0 0.0
    %619 = vmatpush1.msra.mxu0 0.0
    %620 = vmatprep.subr.mxu0 0.0
    %621 = vmatpush1.msra.mxu0 0.0
    %622 = vmatprep.subr.mxu0 0.0
    %623 = vmatpush1.msra.mxu0 0.0
    %624 = vmatprep.subr.mxu0 0.0
    %625 = vmatpush1.msra.mxu0 0.0
    %626 = vmatprep.subr.mxu0 0.0
    %627 = vmatpush1.msra.mxu0 0.0
    %628 = vmatprep.subr.mxu0 0.0
    %629 = vmatpush1.msra.mxu0 0.0
    %630 = vmatprep.subr.mxu0 0.0
    %631 = vmatpush1.msra.mxu0 0.0
    %632 = vmatprep.subr.mxu0 0.0
    %633 = vmatpush1.msra.mxu0 0.0
    %634 = vmatprep.subr.mxu0 0.0
    %635 = vmatpush1.msra.mxu0 0.0
    %636 = vmatprep.subr.mxu0 0.0
    %637 = vmatpush1.msra.mxu0 0.0
    %638 = vmatprep.subr.mxu0 0.0
    %639 = vmatpush1.msra.mxu0 0.0
    %640 = vmatprep.subr.mxu0 0.0
    %641 = vmatpush1.msra.mxu0 0.0
    %642 = vmatprep.subr.mxu0 0.0
    %643 = vmatpush1.msra.mxu0 0.0
    %644 = vmatprep.subr.mxu0 0.0
    %645 = vmatpush1.msra.mxu0 0.0
    %646 = vmatprep.subr.mxu0 0.0
    %647 = vmatpush1.msra.mxu0 0.0
    %648 = vmatprep.subr.mxu0 0.0
    %649 = vmatpush1.msra.mxu0 0.0
    %650 = vmatprep.subr.mxu0 0.0
    %651 = vmatpush1.msra.mxu0 0.0
    %652 = vmatprep.subr.mxu0 0.0
    %653 = vmatpush1.msra.mxu0 0.0
    %654 = vmatprep.subr.mxu0 0.0
    %655 = vmatpush1.msra.mxu0 0.0
    %656 = vmatprep.subr.mxu0 0.0
    %657 = vmatpush1.msra.mxu0 0.0
    %658 = vmatprep.subr.mxu0 0.0
    %659 = vmatpush1.msra.mxu0 0.0
    %660 = vmatprep.subr.mxu0 0.0
    %661 = vmatpush1.msra.mxu0 0.0
    %662 = vmatprep.subr.mxu0 0.0
    %663 = vmatpush1.msra.mxu0 0.0
    %664 = vmatprep.subr.mxu0 0.0
    %665 = vmatpush1.msra.mxu0 0.0
    %666 = vmatprep.subr.mxu0 0.0
    %667 = vmatpush1.msra.mxu0 0.0
    %668 = vmatprep.mubr.f32.mxu0 0.0
    %669 = vmatmul.mubr.f32.gmra.mrb[0].mxu0 %v602
    %v670 = vpop.f32.mrb[0].mxu0
    %v671 = vadd.f32 0.0, %v670
    %v672 = vpop.f32.mrb[0].mxu0
    %673 = vdwg.mxu0
    %v674 = vadd.f32 %v601, %v671
    %v675 = vsub.f32 0.0, %v674
    %v676 = vmul.f32 %v675, 1.442695
    %v677 = vpow.pop %v676
    %v678 = vadd.f32 %v677, 1.0
    %v679 = vrcp.pop %v678
    %v680 = vmul.f32 1.0, %v679
    %v681 = vtanh.pop %v674
    %v682 = vmul.f32 %v680, %v589
    %684 = vrot.lane.b32.xlu0 %v681, 64
    %v685 = vpop.permute.xlu0 %684
    %v687 = vmul.f32 %v680, %v685
    %689 = vrot.lane.b32.xlu0 %v687, 32
    %v690 = vpop.permute.xlu0 %689
    %v692 = vadd.f32 %v682, %v690
    %v693 = vtanh.pop %v692
    %695 = vrot.lane.b32.xlu0 %v693, 64
    %v696 = vpop.permute.xlu0 %695
    %v698 = vmul.f32 %v680, %v696
    %700 = vrot.lane.b32.xlu0 %v698, 32
    %v701 = vpop.permute.xlu0 %700
    %703 = vst.msk [vmem:[#allocation3 + $0x6] sm:$0x3] %vm393, %v701
    %v704 = vld [vmem:[#allocation2 + $0x8] sm:$0x3]
    %v705 = vsel %vm184, %v701, 0
    %707 = vmatprep.subr.mxu0 0.0
    %708 = vmatpush1.msra.mxu0 %v286
    %709 = vmatprep.subr.mxu0 0.0
    %710 = vmatpush1.msra.mxu0 %v287
    %711 = vmatprep.subr.mxu0 0.0
    %712 = vmatpush1.msra.mxu0 %v288
    %713 = vmatprep.subr.mxu0 0.0
    %714 = vmatpush1.msra.mxu0 %v289
    %715 = vmatprep.subr.mxu0 0.0
    %716 = vmatpush1.msra.mxu0 0.0
    %717 = vmatprep.subr.mxu0 0.0
    %718 = vmatpush1.msra.mxu0 0.0
    %719 = vmatprep.subr.mxu0 0.0
    %720 = vmatpush1.msra.mxu0 0.0
    %721 = vmatprep.subr.mxu0 0.0
    %722 = vmatpush1.msra.mxu0 0.0
    %723 = vmatprep.subr.mxu0 0.0
    %724 = vmatpush1.msra.mxu0 0.0
    %725 = vmatprep.subr.mxu0 0.0
    %726 = vmatpush1.msra.mxu0 0.0
    %727 = vmatprep.subr.mxu0 0.0
    %728 = vmatpush1.msra.mxu0 0.0
    %729 = vmatprep.subr.mxu0 0.0
    %730 = vmatpush1.msra.mxu0 0.0
    %731 = vmatprep.subr.mxu0 0.0
    %732 = vmatpush1.msra.mxu0 0.0
    %733 = vmatprep.subr.mxu0 0.0
    %734 = vmatpush1.msra.mxu0 0.0
    %735 = vmatprep.subr.mxu0 0.0
    %736 = vmatpush1.msra.mxu0 0.0
    %737 = vmatprep.subr.mxu0 0.0
    %738 = vmatpush1.msra.mxu0 0.0
    %739 = vmatprep.subr.mxu0 0.0
    %740 = vmatpush1.msra.mxu0 0.0
    %741 = vmatprep.subr.mxu0 0.0
    %742 = vmatpush1.msra.mxu0 0.0
    %743 = vmatprep.subr.mxu0 0.0
    %744 = vmatpush1.msra.mxu0 0.0
    %745 = vmatprep.subr.mxu0 0.0
    %746 = vmatpush1.msra.mxu0 0.0
    %747 = vmatprep.subr.mxu0 0.0
    %748 = vmatpush1.msra.mxu0 0.0
    %749 = vmatprep.subr.mxu0 0.0
    %750 = vmatpush1.msra.mxu0 0.0
    %751 = vmatprep.subr.mxu0 0.0
    %752 = vmatpush1.msra.mxu0 0.0
    %753 = vmatprep.subr.mxu0 0.0
    %754 = vmatpush1.msra.mxu0 0.0
    %755 = vmatprep.subr.mxu0 0.0
    %756 = vmatpush1.msra.mxu0 0.0
    %757 = vmatprep.subr.mxu0 0.0
    %758 = vmatpush1.msra.mxu0 0.0
    %759 = vmatprep.subr.mxu0 0.0
    %760 = vmatpush1.msra.mxu0 0.0
    %761 = vmatprep.subr.mxu0 0.0
    %762 = vmatpush1.msra.mxu0 0.0
    %763 = vmatprep.subr.mxu0 0.0
    %764 = vmatpush1.msra.mxu0 0.0
    %765 = vmatprep.subr.mxu0 0.0
    %766 = vmatpush1.msra.mxu0 0.0
    %767 = vmatprep.subr.mxu0 0.0
    %768 = vmatpush1.msra.mxu0 0.0
    %769 = vmatprep.subr.mxu0 0.0
    %770 = vmatpush1.msra.mxu0 0.0
    %771 = vmatprep.mubr.f32.mxu0 0.0
    %772 = vmatmul.mubr.f32.gmra.mrb[0].mxu0 %v705
    %v773 = vpop.f32.mrb[0].mxu0
    %v774 = vadd.f32 0.0, %v773
    %v775 = vpop.f32.mrb[0].mxu0
    %776 = vdwg.mxu0
    %v777 = vadd.f32 %v704, %v774
    %v778 = vsub.f32 0.0, %v777
    %v779 = vmul.f32 %v778, 1.442695
    %v780 = vpow.pop %v779
    %v781 = vadd.f32 %v780, 1.0
    %v782 = vrcp.pop %v781
    %v783 = vmul.f32 1.0, %v782
    %v784 = vtanh.pop %v777
    %v785 = vmul.f32 %v783, %v692
    %787 = vrot.lane.b32.xlu0 %v784, 64
    %v788 = vpop.permute.xlu0 %787
    %v790 = vmul.f32 %v783, %v788
    %792 = vrot.lane.b32.xlu0 %v790, 32
    %v793 = vpop.permute.xlu0 %792
    %v795 = vadd.f32 %v785, %v793
    %v796 = vtanh.pop %v795
    %798 = vrot.lane.b32.xlu0 %v796, 64
    %v799 = vpop.permute.xlu0 %798
    %v801 = vmul.f32 %v783, %v799
    %803 = vrot.lane.b32.xlu0 %v801, 32
    %v804 = vpop.permute.xlu0 %803
    %806 = vst.msk [vmem:[#allocation3 + $0x8] sm:$0x3] %vm393, %v804
    %v807 = vld [vmem:[#allocation2 + $0xa] sm:$0x3]
    %v808 = vsel %vm184, %v804, 0
    %810 = vmatprep.subr.mxu0 0.0
    %811 = vmatpush1.msra.mxu0 %v286
    %812 = vmatprep.subr.mxu0 0.0
    %813 = vmatpush1.msra.mxu0 %v287
    %814 = vmatprep.subr.mxu0 0.0
    %815 = vmatpush1.msra.mxu0 %v288
    %816 = vmatprep.subr.mxu0 0.0
    %817 = vmatpush1.msra.mxu0 %v289
    %818 = vmatprep.subr.mxu0 0.0
    %819 = vmatpush1.msra.mxu0 0.0
    %820 = vmatprep.subr.mxu0 0.0
    %821 = vmatpush1.msra.mxu0 0.0
    %822 = vmatprep.subr.mxu0 0.0
    %823 = vmatpush1.msra.mxu0 0.0
    %824 = vmatprep.subr.mxu0 0.0
    %825 = vmatpush1.msra.mxu0 0.0
    %826 = vmatprep.subr.mxu0 0.0
    %827 = vmatpush1.msra.mxu0 0.0
    %828 = vmatprep.subr.mxu0 0.0
    %829 = vmatpush1.msra.mxu0 0.0
    %830 = vmatprep.subr.mxu0 0.0
    %831 = vmatpush1.msra.mxu0 0.0
    %832 = vmatprep.subr.mxu0 0.0
    %833 = vmatpush1.msra.mxu0 0.0
    %834 = vmatprep.subr.mxu0 0.0
    %835 = vmatpush1.msra.mxu0 0.0
    %836 = vmatprep.subr.mxu0 0.0
    %837 = vmatpush1.msra.mxu0 0.0
    %838 = vmatprep.subr.mxu0 0.0
    %839 = vmatpush1.msra.mxu0 0.0
    %840 = vmatprep.subr.mxu0 0.0
    %841 = vmatpush1.msra.mxu0 0.0
    %842 = vmatprep.subr.mxu0 0.0
    %843 = vmatpush1.msra.mxu0 0.0
    %844 = vmatprep.subr.mxu0 0.0
    %845 = vmatpush1.msra.mxu0 0.0
    %846 = vmatprep.subr.mxu0 0.0
    %847 = vmatpush1.msra.mxu0 0.0
    %848 = vmatprep.subr.mxu0 0.0
    %849 = vmatpush1.msra.mxu0 0.0
    %850 = vmatprep.subr.mxu0 0.0
    %851 = vmatpush1.msra.mxu0 0.0
    %852 = vmatprep.subr.mxu0 0.0
    %853 = vmatpush1.msra.mxu0 0.0
    %854 = vmatprep.subr.mxu0 0.0
    %855 = vmatpush1.msra.mxu0 0.0
    %856 = vmatprep.subr.mxu0 0.0
    %857 = vmatpush1.msra.mxu0 0.0
    %858 = vmatprep.subr.mxu0 0.0
    %859 = vmatpush1.msra.mxu0 0.0
    %860 = vmatprep.subr.mxu0 0.0
    %861 = vmatpush1.msra.mxu0 0.0
    %862 = vmatprep.subr.mxu0 0.0
    %863 = vmatpush1.msra.mxu0 0.0
    %864 = vmatprep.subr.mxu0 0.0
    %865 = vmatpush1.msra.mxu0 0.0
    %866 = vmatprep.subr.mxu0 0.0
    %867 = vmatpush1.msra.mxu0 0.0
    %868 = vmatprep.subr.mxu0 0.0
    %869 = vmatpush1.msra.mxu0 0.0
    %870 = vmatprep.subr.mxu0 0.0
    %871 = vmatpush1.msra.mxu0 0.0
    %872 = vmatprep.subr.mxu0 0.0
    %873 = vmatpush1.msra.mxu0 0.0
    %874 = vmatprep.mubr.f32.mxu0 0.0
    %875 = vmatmul.mubr.f32.gmra.mrb[0].mxu0 %v808
    %v876 = vpop.f32.mrb[0].mxu0
    %v877 = vadd.f32 0.0, %v876
    %v878 = vpop.f32.mrb[0].mxu0
    %879 = vdwg.mxu0
    %v880 = vadd.f32 %v807, %v877
    %v881 = vsub.f32 0.0, %v880
    %v882 = vmul.f32 %v881, 1.442695
    %v883 = vpow.pop %v882
    %v884 = vadd.f32 %v883, 1.0
    %v885 = vrcp.pop %v884
    %v886 = vmul.f32 1.0, %v885
    %v887 = vtanh.pop %v880
    %v888 = vmul.f32 %v886, %v795
    %890 = vrot.lane.b32.xlu0 %v887, 64
    %v891 = vpop.permute.xlu0 %890
    %v893 = vmul.f32 %v886, %v891
    %895 = vrot.lane.b32.xlu0 %v893, 32
    %v896 = vpop.permute.xlu0 %895
    %v898 = vadd.f32 %v888, %v896
    %v899 = vtanh.pop %v898
    %901 = vrot.lane.b32.xlu0 %v899, 64
    %v902 = vpop.permute.xlu0 %901
    %v904 = vmul.f32 %v886, %v902
    %906 = vrot.lane.b32.xlu0 %v904, 32
    %v907 = vpop.permute.xlu0 %906
    %909 = vst.msk [vmem:[#allocation3 + $0xa] sm:$0x3] %vm393, %v907
    %v910 = vld [vmem:[#allocation2 + $0xc] sm:$0x3]
    %v911 = vsel %vm184, %v907, 0
    %913 = vmatprep.subr.mxu0 0.0
    %914 = vmatpush1.msra.mxu0 %v286
    %915 = vmatprep.subr.mxu0 0.0
    %916 = vmatpush1.msra.mxu0 %v287
    %917 = vmatprep.subr.mxu0 0.0
    %918 = vmatpush1.msra.mxu0 %v288
    %919 = vmatprep.subr.mxu0 0.0
    %920 = vmatpush1.msra.mxu0 %v289
    %921 = vmatprep.subr.mxu0 0.0
    %922 = vmatpush1.msra.mxu0 0.0
    %923 = vmatprep.subr.mxu0 0.0
    %924 = vmatpush1.msra.mxu0 0.0
    %925 = vmatprep.subr.mxu0 0.0
    %926 = vmatpush1.msra.mxu0 0.0
    %927 = vmatprep.subr.mxu0 0.0
    %928 = vmatpush1.msra.mxu0 0.0
    %929 = vmatprep.subr.mxu0 0.0
    %930 = vmatpush1.msra.mxu0 0.0
    %931 = vmatprep.subr.mxu0 0.0
    %932 = vmatpush1.msra.mxu0 0.0
    %933 = vmatprep.subr.mxu0 0.0
    %934 = vmatpush1.msra.mxu0 0.0
    %935 = vmatprep.subr.mxu0 0.0
    %936 = vmatpush1.msra.mxu0 0.0
    %937 = vmatprep.subr.mxu0 0.0
    %938 = vmatpush1.msra.mxu0 0.0
    %939 = vmatprep.subr.mxu0 0.0
    %940 = vmatpush1.msra.mxu0 0.0
    %941 = vmatprep.subr.mxu0 0.0
    %942 = vmatpush1.msra.mxu0 0.0
    %943 = vmatprep.subr.mxu0 0.0
    %944 = vmatpush1.msra.mxu0 0.0
    %945 = vmatprep.subr.mxu0 0.0
    %946 = vmatpush1.msra.mxu0 0.0
    %947 = vmatprep.subr.mxu0 0.0
    %948 = vmatpush1.msra.mxu0 0.0
    %949 = vmatprep.subr.mxu0 0.0
    %950 = vmatpush1.msra.mxu0 0.0
    %951 = vmatprep.subr.mxu0 0.0
    %952 = vmatpush1.msra.mxu0 0.0
    %953 = vmatprep.subr.mxu0 0.0
    %954 = vmatpush1.msra.mxu0 0.0
    %955 = vmatprep.subr.mxu0 0.0
    %956 = vmatpush1.msra.mxu0 0.0
    %957 = vmatprep.subr.mxu0 0.0
    %958 = vmatpush1.msra.mxu0 0.0
    %959 = vmatprep.subr.mxu0 0.0
    %960 = vmatpush1.msra.mxu0 0.0
    %961 = vmatprep.subr.mxu0 0.0
    %962 = vmatpush1.msra.mxu0 0.0
    %963 = vmatprep.subr.mxu0 0.0
    %964 = vmatpush1.msra.mxu0 0.0
    %965 = vmatprep.subr.mxu0 0.0
    %966 = vmatpush1.msra.mxu0 0.0
    %967 = vmatprep.subr.mxu0 0.0
    %968 = vmatpush1.msra.mxu0 0.0
    %969 = vmatprep.subr.mxu0 0.0
    %970 = vmatpush1.msra.mxu0 0.0
    %971 = vmatprep.subr.mxu0 0.0
    %972 = vmatpush1.msra.mxu0 0.0
    %973 = vmatprep.subr.mxu0 0.0
    %974 = vmatpush1.msra.mxu0 0.0
    %975 = vmatprep.subr.mxu0 0.0
    %976 = vmatpush1.msra.mxu0 0.0
    %977 = vmatprep.mubr.f32.mxu0 0.0
    %978 = vmatmul.mubr.f32.gmra.mrb[0].mxu0 %v911
    %v979 = vpop.f32.mrb[0].mxu0
    %v980 = vadd.f32 0.0, %v979
    %v981 = vpop.f32.mrb[0].mxu0
    %982 = vdwg.mxu0
    %v983 = vadd.f32 %v910, %v980
    %v984 = vsub.f32 0.0, %v983
    %v985 = vmul.f32 %v984, 1.442695
    %v986 = vpow.pop %v985
    %v987 = vadd.f32 %v986, 1.0
    %v988 = vrcp.pop %v987
    %v989 = vmul.f32 1.0, %v988
    %v990 = vtanh.pop %v983
    %v991 = vmul.f32 %v989, %v898
    %993 = vrot.lane.b32.xlu0 %v990, 64
    %v994 = vpop.permute.xlu0 %993
    %v996 = vmul.f32 %v989, %v994
    %998 = vrot.lane.b32.xlu0 %v996, 32
    %v999 = vpop.permute.xlu0 %998
    %v1001 = vadd.f32 %v991, %v999
    %v1002 = vtanh.pop %v1001
    %1004 = vrot.lane.b32.xlu0 %v1002, 64
    %v1005 = vpop.permute.xlu0 %1004
    %v1007 = vmul.f32 %v989, %v1005
    %1009 = vrot.lane.b32.xlu0 %v1007, 32
    %v1010 = vpop.permute.xlu0 %1009
    %1012 = vst.msk [vmem:[#allocation3 + $0xc] sm:$0x3] %vm393, %v1010
    %v1013 = vld [vmem:[#allocation2 + $0xe] sm:$0x3]
    %v1014 = vsel %vm184, %v1010, 0
    %1016 = vmatprep.subr.mxu0 0.0
    %1017 = vmatpush1.msra.mxu0 %v286
    %1018 = vmatprep.subr.mxu0 0.0
    %1019 = vmatpush1.msra.mxu0 %v287
    %1020 = vmatprep.subr.mxu0 0.0
    %1021 = vmatpush1.msra.mxu0 %v288
    %1022 = vmatprep.subr.mxu0 0.0
    %1023 = vmatpush1.msra.mxu0 %v289
    %1024 = vmatprep.subr.mxu0 0.0
    %1025 = vmatpush1.msra.mxu0 0.0
    %1026 = vmatprep.subr.mxu0 0.0
    %1027 = vmatpush1.msra.mxu0 0.0
    %1028 = vmatprep.subr.mxu0 0.0
    %1029 = vmatpush1.msra.mxu0 0.0
    %1030 = vmatprep.subr.mxu0 0.0
    %1031 = vmatpush1.msra.mxu0 0.0
    %1032 = vmatprep.subr.mxu0 0.0
    %1033 = vmatpush1.msra.mxu0 0.0
    %1034 = vmatprep.subr.mxu0 0.0
    %1035 = vmatpush1.msra.mxu0 0.0
    %1036 = vmatprep.subr.mxu0 0.0
    %1037 = vmatpush1.msra.mxu0 0.0
    %1038 = vmatprep.subr.mxu0 0.0
    %1039 = vmatpush1.msra.mxu0 0.0
    %1040 = vmatprep.subr.mxu0 0.0
    %1041 = vmatpush1.msra.mxu0 0.0
    %1042 = vmatprep.subr.mxu0 0.0
    %1043 = vmatpush1.msra.mxu0 0.0
    %1044 = vmatprep.subr.mxu0 0.0
    %1045 = vmatpush1.msra.mxu0 0.0
    %1046 = vmatprep.subr.mxu0 0.0
    %1047 = vmatpush1.msra.mxu0 0.0
    %1048 = vmatprep.subr.mxu0 0.0
    %1049 = vmatpush1.msra.mxu0 0.0
    %1050 = vmatprep.subr.mxu0 0.0
    %1051 = vmatpush1.msra.mxu0 0.0
    %1052 = vmatprep.subr.mxu0 0.0
    %1053 = vmatpush1.msra.mxu0 0.0
    %1054 = vmatprep.subr.mxu0 0.0
    %1055 = vmatpush1.msra.mxu0 0.0
    %1056 = vmatprep.subr.mxu0 0.0
    %1057 = vmatpush1.msra.mxu0 0.0
    %1058 = vmatprep.subr.mxu0 0.0
    %1059 = vmatpush1.msra.mxu0 0.0
    %1060 = vmatprep.subr.mxu0 0.0
    %1061 = vmatpush1.msra.mxu0 0.0
    %1062 = vmatprep.subr.mxu0 0.0
    %1063 = vmatpush1.msra.mxu0 0.0
    %1064 = vmatprep.subr.mxu0 0.0
    %1065 = vmatpush1.msra.mxu0 0.0
    %1066 = vmatprep.subr.mxu0 0.0
    %1067 = vmatpush1.msra.mxu0 0.0
    %1068 = vmatprep.subr.mxu0 0.0
    %1069 = vmatpush1.msra.mxu0 0.0
    %1070 = vmatprep.subr.mxu0 0.0
    %1071 = vmatpush1.msra.mxu0 0.0
    %1072 = vmatprep.subr.mxu0 0.0
    %1073 = vmatpush1.msra.mxu0 0.0
    %1074 = vmatprep.subr.mxu0 0.0
    %1075 = vmatpush1.msra.mxu0 0.0
    %1076 = vmatprep.subr.mxu0 0.0
    %1077 = vmatpush1.msra.mxu0 0.0
    %1078 = vmatprep.subr.mxu0 0.0
    %1079 = vmatpush1.msra.mxu0 0.0
    %1080 = vmatprep.mubr.f32.mxu0 0.0
    %1081 = vmatmul.mubr.f32.gmra.mrb[0].mxu0 %v1014
    %v1082 = vpop.f32.mrb[0].mxu0
    %v1083 = vadd.f32 0.0, %v1082
    %v1084 = vpop.f32.mrb[0].mxu0
    %1085 = vdwg.mxu0
    %v1086 = vadd.f32 %v1013, %v1083
    %v1087 = vsub.f32 0.0, %v1086
    %v1088 = vmul.f32 %v1087, 1.442695
    %v1089 = vpow.pop %v1088
    %v1090 = vadd.f32 %v1089, 1.0
    %v1091 = vrcp.pop %v1090
    %v1092 = vmul.f32 1.0, %v1091
    %v1093 = vtanh.pop %v1086
    %v1094 = vmul.f32 %v1092, %v1001
    %1096 = vrot.lane.b32.xlu0 %v1093, 64
    %v1097 = vpop.permute.xlu0 %1096
    %v1099 = vmul.f32 %v1092, %v1097
    %1101 = vrot.lane.b32.xlu0 %v1099, 32
    %v1102 = vpop.permute.xlu0 %1101
    %v1104 = vadd.f32 %v1094, %v1102
    %v1105 = vtanh.pop %v1104
    %1107 = vrot.lane.b32.xlu0 %v1105, 64
    %v1108 = vpop.permute.xlu0 %1107
    %v1110 = vmul.f32 %v1092, %v1108
    %1112 = vrot.lane.b32.xlu0 %v1110, 32
    %v1113 = vpop.permute.xlu0 %1112
    %1115 = vst.msk [vmem:[#allocation3 + $0xe] sm:$0x3] %vm393, %v1113
    %v1116 = vld [vmem:[#allocation3] sm:$0x3]
    %v1117 = vld [vmem:[#allocation3 + $0xe] sm:$0x3]
    %vm1118 = vcmask 130048
    %v1119 = vsel %vm1118, %v1116, %v1117
    %1120 = vst.msk [vmem:[#allocation4] sm:$0x3] %vm393, %v1119
    %v1121 = vld [vmem:[#allocation3 + $0x2] sm:$0x3]
    %v1122 = vld [vmem:[#allocation3 + $0xc] sm:$0x3]
    %v1123 = vsel %vm1118, %v1121, %v1122
    %s1124 = scalar_lea.vmem [#allocation4], 2
    %1125 = vst.msk [vmem:[%s1124] sm:$0x3] %vm393, %v1123
    %v1126 = vld [vmem:[#allocation3 + $0x4] sm:$0x3]
    %v1127 = vld [vmem:[#allocation3 + $0xa] sm:$0x3]
    %v1128 = vsel %vm1118, %v1126, %v1127
    %s1129 = scalar_lea.vmem [#allocation4], 4
    %1130 = vst.msk [vmem:[%s1129] sm:$0x3] %vm393, %v1128
    %v1131 = vld [vmem:[#allocation3 + $0x6] sm:$0x3]
    %v1132 = vld [vmem:[#allocation3 + $0x8] sm:$0x3]
    %v1133 = vsel %vm1118, %v1131, %v1132
    %s1134 = scalar_lea.vmem [#allocation4], 6
    %1135 = vst.msk [vmem:[%s1134] sm:$0x3] %vm393, %v1133
    %v1136 = vld [vmem:[#allocation3 + $0x8] sm:$0x3]
    %v1137 = vld [vmem:[#allocation3 + $0x6] sm:$0x3]
    %v1138 = vsel %vm1118, %v1136, %v1137
    %s1139 = scalar_lea.vmem [#allocation4], 8
    %1140 = vst.msk [vmem:[%s1139] sm:$0x3] %vm393, %v1138
    %v1141 = vld [vmem:[#allocation3 + $0xa] sm:$0x3]
    %v1142 = vld [vmem:[#allocation3 + $0x4] sm:$0x3]
    %v1143 = vsel %vm1118, %v1141, %v1142
    %s1144 = scalar_lea.vmem [#allocation4], 10
    %1145 = vst.msk [vmem:[%s1144] sm:$0x3] %vm393, %v1143
    %v1146 = vld [vmem:[#allocation3 + $0xc] sm:$0x3]
    %v1147 = vld [vmem:[#allocation3 + $0x2] sm:$0x3]
    %v1148 = vsel %vm1118, %v1146, %v1147
    %s1149 = scalar_lea.vmem [#allocation4], 12
    %1150 = vst.msk [vmem:[%s1149] sm:$0x3] %vm393, %v1148
    %v1151 = vld [vmem:[#allocation3 + $0xe] sm:$0x3]
    %v1152 = vld [vmem:[#allocation3] sm:$0x3]
    %v1153 = vsel %vm1118, %v1151, %v1152
    %s1154 = scalar_lea.vmem [#allocation4], 14
    %1155 = vst.msk [vmem:[%s1154] sm:$0x3] %vm393, %v1153
    %1157 = vrot.lane.b32.xlu0 %v1104, 96
    %v1158 = vpop.permute.xlu0 %1157
    %vm1160 = vcmask 123904
    %1161 = vst.msk [vmem:[#allocation8] sm:$0x3] %vm1160, %v1158
    %1162 = vrot.lane.b32.xlu0 %v1104, 80
    %v1163 = vpop.permute.xlu0 %1162
    %s1165 = scalar_lea.vmem [#allocation8], 2
    %1166 = vst.msk [vmem:[%s1165] sm:$0x3] %vm1160, %v1163
    %v1167 = vld [vmem:[%s5] sm:$0xff]
    %v1168 = vld [vmem:[%s5 + $0x8] sm:$0xff]
    %v1169 = vld [vmem:[%s5 + $0x10] sm:$0xff]
    %v1170 = vld [vmem:[%s5 + $0x18] sm:$0xff]
    %v1171 = vld [vmem:[%s6] sm:$0x1]
    %v1173 = vlaneseq
    %v1174 = vshrl.u32 %v1173, 7
    %v1175 = vsub.s32 0, %v1174
    %v1176 = vrot.slane %v1171, %v1175
    %v1178 = vsel %vm184, %v1113, 0
    %1180 = vmatprep.subr.mxu0 0.0
    %1181 = vmatpush1.msra.mxu0 %v1167
    %1182 = vmatprep.subr.mxu0 0.0
    %1183 = vmatpush1.msra.mxu0 %v1168
    %1184 = vmatprep.subr.mxu0 0.0
    %1185 = vmatpush1.msra.mxu0 %v1169
    %1186 = vmatprep.subr.mxu0 0.0
    %1187 = vmatpush1.msra.mxu0 %v1170
    %1188 = vmatprep.subr.mxu0 0.0
    %1189 = vmatpush1.msra.mxu0 0.0
    %1190 = vmatprep.subr.mxu0 0.0
    %1191 = vmatpush1.msra.mxu0 0.0
    %1192 = vmatprep.subr.mxu0 0.0
    %1193 = vmatpush1.msra.mxu0 0.0
    %1194 = vmatprep.subr.mxu0 0.0
    %1195 = vmatpush1.msra.mxu0 0.0
    %1196 = vmatprep.subr.mxu0 0.0
    %1197 = vmatpush1.msra.mxu0 0.0
    %1198 = vmatprep.subr.mxu0 0.0
    %1199 = vmatpush1.msra.mxu0 0.0
    %1200 = vmatprep.subr.mxu0 0.0
    %1201 = vmatpush1.msra.mxu0 0.0
    %1202 = vmatprep.subr.mxu0 0.0
    %1203 = vmatpush1.msra.mxu0 0.0
    %1204 = vmatprep.subr.mxu0 0.0
    %1205 = vmatpush1.msra.mxu0 0.0
    %1206 = vmatprep.subr.mxu0 0.0
    %1207 = vmatpush1.msra.mxu0 0.0
    %1208 = vmatprep.subr.mxu0 0.0
    %1209 = vmatpush1.msra.mxu0 0.0
    %1210 = vmatprep.subr.mxu0 0.0
    %1211 = vmatpush1.msra.mxu0 0.0
    %1212 = vmatprep.subr.mxu0 0.0
    %1213 = vmatpush1.msra.mxu0 0.0
    %1214 = vmatprep.subr.mxu0 0.0
    %1215 = vmatpush1.msra.mxu0 0.0
    %1216 = vmatprep.subr.mxu0 0.0
    %1217 = vmatpush1.msra.mxu0 0.0
    %1218 = vmatprep.subr.mxu0 0.0
    %1219 = vmatpush1.msra.mxu0 0.0
    %1220 = vmatprep.subr.mxu0 0.0
    %1221 = vmatpush1.msra.mxu0 0.0
    %1222 = vmatprep.subr.mxu0 0.0
    %1223 = vmatpush1.msra.mxu0 0.0
    %1224 = vmatprep.subr.mxu0 0.0
    %1225 = vmatpush1.msra.mxu0 0.0
    %1226 = vmatprep.subr.mxu0 0.0
    %1227 = vmatpush1.msra.mxu0 0.0
    %1228 = vmatprep.subr.mxu0 0.0
    %1229 = vmatpush1.msra.mxu0 0.0
    %1230 = vmatprep.subr.mxu0 0.0
    %1231 = vmatpush1.msra.mxu0 0.0
    %1232 = vmatprep.subr.mxu0 0.0
    %1233 = vmatpush1.msra.mxu0 0.0
    %1234 = vmatprep.subr.mxu0 0.0
    %1235 = vmatpush1.msra.mxu0 0.0
    %1236 = vmatprep.subr.mxu0 0.0
    %1237 = vmatpush1.msra.mxu0 0.0
    %1238 = vmatprep.subr.mxu0 0.0
    %1239 = vmatpush1.msra.mxu0 0.0
    %1240 = vmatprep.subr.mxu0 0.0
    %1241 = vmatpush1.msra.mxu0 0.0
    %1242 = vmatprep.subr.mxu0 0.0
    %1243 = vmatpush1.msra.mxu0 0.0
    %1244 = vmatprep.mubr.f32.mxu0 0.0
    %1245 = vmatmul.mubr.f32.gmra.mrb[0].mxu0 %v1178
    %v1246 = vpop.f32.mrb[0].mxu0
    %v1247 = vadd.f32 %v1176, %v1246
    %v1248 = vpop.f32.mrb[0].mxu0
    %1249 = vdwg.mxu0
    %v1250 = vtanh.pop %v1247
    %1251 = vst.msk [vmem:[#allocation6] sm:$0x3] %vm393, %v1250
    // Predicated region
    $region30: #{encoder_forward.1} parent=1 // pred_check
      _
    $region31: #{encoder_forward.1} parent=1 // pred_check_branch
      %1253 = sbr.rel (0) target = $region33
    $region32: #{encoder_forward.1} parent=1 // pred_region
      %s1255 = ssub.s32 256, 256
      %1256 = vsyncadd [#allocation5], %s1255
      %s1257 = sshll.u32 [#allocation4], 4
      %s1258 = int_to_ptr.vmem [resolvable:$true] %s1257
      %1263 = dma.vmem_to_hbm [thread:$0]  %s1258, 256, %s7, [#allocation5], 32, 32, 2
    $region33: #{encoder_forward.1} parent=1 // pred_fallthru
      _
    // Predicated region
    $region34: #{encoder_forward.1} parent=1 // pred_check
      _
    $region35: #{encoder_forward.1} parent=1 // pred_check_branch
      %1265 = sbr.rel (0) target = $region37
    $region36: #{encoder_forward.1} parent=1 // pred_region
      %s1267 = ssub.s32 32, 32
      %1268 = vsyncadd [#allocation7], %s1267
      %s1270 = sshll.u32 [#allocation6], 4
      %s1271 = int_to_ptr.vmem [resolvable:$true] %s1270
      %1273 = dma.vmem_to_hbm [thread:$0]  %s1271, 32, %s8, [#allocation7]
    $region37: #{encoder_forward.1} parent=1 // pred_fallthru
      _
    // Predicated region
    $region38: #{encoder_forward.1} parent=1 // pred_check
      _
    $region39: #{encoder_forward.1} parent=1 // pred_check_branch
      %1275 = sbr.rel (0) target = $region41
    $region40: #{encoder_forward.1} parent=1 // pred_region
      %s1277 = ssub.s32 64, 64
      %1278 = vsyncadd [#allocation7], %s1277
      %s1279 = sshll.u32 [#allocation8], 4
      %s1280 = int_to_ptr.vmem [resolvable:$true] %s1279
      %1285 = dma.vmem_to_hbm [thread:$0]  %s1280, 64, %s9, [#allocation7], 32, 32, 2
    $region41: #{encoder_forward.1} parent=1 // pred_fallthru
      _
    // Predicated region
    $region42: #{encoder_forward.1} parent=1 // pred_check
      _
    $region43: #{encoder_forward.1} parent=1 // pred_check_branch
      %1287 = sbr.rel (0) target = $region45
    $region44: #{encoder_forward.1} parent=1 // pred_region
      %1288 = dma.done [#allocation5], 256
    $region45: #{encoder_forward.1} parent=1 // pred_fallthru
      _
    // Predicated region
    $region46: #{encoder_forward.1} parent=1 // pred_check
      _
    $region47: #{encoder_forward.1} parent=1 // pred_check_branch
      %1290 = sbr.rel (0) target = $region49
    $region48: #{encoder_forward.1} parent=1 // pred_region
      %1291 = dma.done [#allocation7], 32
    $region49: #{encoder_forward.1} parent=1 // pred_fallthru
      _
    // Predicated region
    $region50: #{encoder_forward.1} parent=1 // pred_check
      _
    $region51: #{encoder_forward.1} parent=1 // pred_check_branch
      %1293 = sbr.rel (0) target = $region53
    $region52: #{encoder_forward.1} parent=1 // pred_region
      %1294 = dma.done [#allocation7], 64
    $region53: #{encoder_forward.1} parent=1 // pred_fallthru
      _
    %1295 = vsyncpa [#allocation5], 1
    %1296 = vsyncpa [#allocation7], 1

</llo_original>
